<compile_context>
chip_gen: v6e
topology: v6e:2x2x1
jax: 0.10.0
libtpu: 0.0.40
codegen_flags: <defaults>
</compile_context>

<pallas_src>
import functools

import jax
import jax.numpy as jnp
import numpy as np
from jax import lax
from jax.experimental import pallas as pl
from jax.experimental.pallas import tpu as pltpu


# ---------------------------------------------------------------------------
# Fused kernel: QKV proj -> MHA -> out proj -> +res -> LN1 -> FFN -> +res -> LN2
# grid = (B // block_b,)
# ---------------------------------------------------------------------------
def _encoder_layer_kernel(x_ref, mask_ref,
                          wq_ref, bq_ref, wk_ref, bk_ref, wv_ref, bv_ref,
                          wo_ref, bo_ref, g1_ref, beta1_ref,
                          w1_ref, b1_ref, w2_ref, b2_ref,
                          g2_ref, beta2_ref,
                          out_ref, *, n_heads, head_dim, eps):
    Bt, S, H = x_ref.shape
    NHD = n_heads * head_dim

    # ------------------ fused QKV projections (bf16 MXU, f32 accum) ---------
    x = x_ref[...].astype(jnp.float32).reshape(Bt * S, H)        # (Bt*S, H)
    x_bf = x.astype(jnp.bfloat16)

    q = jnp.dot(x_bf, wq_ref[...], preferred_element_type=jnp.float32) + bq_ref[...]
    k = jnp.dot(x_bf, wk_ref[...], preferred_element_type=jnp.float32) + bk_ref[...]
    v = jnp.dot(x_bf, wv_ref[...], preferred_element_type=jnp.float32) + bv_ref[...]

    inv_scale = jnp.float32(1.0 / (head_dim ** 0.5))
    qb = (q * inv_scale).astype(jnp.bfloat16).reshape(Bt, S, NHD)   # scale folded once
    kb = k.astype(jnp.bfloat16).reshape(Bt, S, NHD)
    vb = v.astype(jnp.bfloat16).reshape(Bt, S, NHD)

    # additive mask bias, computed ONCE per program (f32, reused by all heads)
    bias = jnp.where(mask_ref[...] > 0, jnp.float32(-1e9), jnp.float32(0.0))

    # ------------------ per-head attention (scores/softmax/context) ---------
    ctxs = []
    for h in range(n_heads):
        lo = h * head_dim
        hi = lo + head_dim
        qh = qb[:, :, lo:hi]                                     # (Bt, S, hd) bf16
        kh = kb[:, :, lo:hi]
        vh = vb[:, :, lo:hi]
        # contracts last dims directly -> no explicit transpose of K
        s = jnp.einsum("bqd,bkd->bqk", qh, kh,
                       preferred_element_type=jnp.float32) + bias  # (Bt, S, S) f32
        m = jnp.max(s, axis=-1, keepdims=True)
        e = jnp.exp(s - m)
        p = e * pl.reciprocal(jnp.sum(e, axis=-1, keepdims=True), approx=True)
        ctxs.append(jnp.einsum("bqk,bkd->bqd", p.astype(jnp.bfloat16), vh,
                               preferred_element_type=jnp.float32))  # (Bt, S, hd)

    # single output projection over the concatenated heads (full-K MXU matmul)
    ctx = jnp.concatenate(ctxs, axis=-1).reshape(Bt * S, NHD)
    attn = jnp.dot(ctx.astype(jnp.bfloat16), wo_ref[...],
                   preferred_element_type=jnp.float32) + bo_ref[...]  # (Bt*S, H)

    # ------------------ residual + LayerNorm1 (f32) --------------------------
    y1 = x + attn
    mu1 = jnp.mean(y1, axis=-1, keepdims=True)
    var1 = jnp.mean((y1 - mu1) ** 2, axis=-1, keepdims=True)
    ln1 = (y1 - mu1) * lax.rsqrt(var1 + eps) * g1_ref[...] + beta1_ref[...]

    # ------------------ position-wise FFN + residual + LayerNorm2 -----------
    h1 = jnp.dot(ln1.astype(jnp.bfloat16), w1_ref[...],
                 preferred_element_type=jnp.float32) + b1_ref[...]
    h1 = jnp.maximum(h1, 0.0)                                    # ReLU
    ff = jnp.dot(h1.astype(jnp.bfloat16), w2_ref[...],
                 preferred_element_type=jnp.float32) + b2_ref[...]

    y2 = ff + ln1
    mu2 = jnp.mean(y2, axis=-1, keepdims=True)
    var2 = jnp.mean((y2 - mu2) ** 2, axis=-1, keepdims=True)
    ln2 = (y2 - mu2) * lax.rsqrt(var2 + eps) * g2_ref[...] + beta2_ref[...]

    out_ref[...] = ln2.reshape(Bt, S, H).astype(out_ref.dtype)


# ---------------------------------------------------------------------------
# Wrapper
# ---------------------------------------------------------------------------
def encoder_layer(x, attn_mask, params, *, n_heads, head_dim, eps=1e-12,
                  block_b=None):
    B, S, H = x.shape
    F = params["w1"].shape[1]
    NHD = n_heads * head_dim

    block_b = B if block_b is None else block_b
    assert B % block_b == 0, "block_b must divide B"
    grid = (B // block_b,)

    bf16 = lambda w: w.astype(jnp.bfloat16)          # weights shipped/held as bf16
    full = lambda shape: pl.BlockSpec(shape, lambda b: (0,) * len(shape))

    kernel = pl.pallas_call(
        functools.partial(_encoder_layer_kernel, n_heads=n_heads,
                          head_dim=head_dim, eps=eps),
        out_shape=jax.ShapeDtypeStruct((B, S, H), jnp.float32),
        grid=grid,
        in_specs=[
            pl.BlockSpec((block_b, S, H), lambda b: (b, 0, 0)),   # x
            pl.BlockSpec((block_b, S, S), lambda b: (b, 0, 0)),   # mask
            full((H, NHD)), full((1, NHD)),                       # Wq, bq
            full((H, NHD)), full((1, NHD)),                       # Wk, bk
            full((H, NHD)), full((1, NHD)),                       # Wv, bv
            full((NHD, H)), full((1, H)),                         # Wo, bo
            full((1, H)), full((1, H)),                           # gamma1, beta1
            full((H, F)), full((1, F)),                           # W1, b1
            full((F, H)), full((1, H)),                           # W2, b2
            full((1, H)), full((1, H)),                           # gamma2, beta2
        ],
        out_specs=pl.BlockSpec((block_b, S, H), lambda b: (b, 0, 0)),
        compiler_params=pltpu.CompilerParams(
            dimension_semantics=("parallel",),
            vmem_limit_bytes=64 * 1024 * 1024),
    )

    return kernel(x, attn_mask,
                  bf16(params["wq"]), params["bq"],
                  bf16(params["wk"]), params["bk"],
                  bf16(params["wv"]), params["bv"],
                  bf16(params["wo"]), params["bo"],
                  params["g1"], params["beta1"],
                  bf16(params["w1"]), params["b1"],
                  bf16(params["w2"]), params["b2"],
                  params["g2"], params["beta2"])


# ---------------------------------------------------------------------------
# Pure-JAX f32 reference (mirrors the PyTorch forward exactly)
# ---------------------------------------------------------------------------
def encoder_layer_ref(x, attn_mask, p, *, n_heads, head_dim, eps=1e-12):
    B, S, H = x.shape
    scale = head_dim ** 0.5

    def ln(y, g, b):
        mu = jnp.mean(y, -1, keepdims=True)
        var = jnp.mean((y - mu) ** 2, -1, keepdims=True)
        return (y - mu) / jnp.sqrt(var + eps) * g + b

    q = (x @ p["wq"] + p["bq"]).reshape(B, S, n_heads, head_dim).transpose(0, 2, 1, 3)
    k = (x @ p["wk"] + p["bk"]).reshape(B, S, n_heads, head_dim).transpose(0, 2, 1, 3)
    v = (x @ p["wv"] + p["bv"]).reshape(B, S, n_heads, head_dim).transpose(0, 2, 1, 3)
    score = jnp.einsum("bhqd,bhkd->bhqk", q, k) / scale
    score = jnp.where(attn_mask[:, None, :, :] > 0, -1e9, score)
    prob = jax.nn.softmax(score, axis=-1)
    ctx = jnp.einsum("bhqk,bhkd->bhqd", prob, v).transpose(0, 2, 1, 3).reshape(B, S, -1)
    attn_out = ctx @ p["wo"] + p["bo"]
    ln1 = ln(x + attn_out, p["g1"], p["beta1"])
    ff = jnp.maximum(ln1 @ p["w1"] + p["b1"], 0.0) @ p["w2"] + p["b2"]
    return ln(ff + ln1, p["g2"], p["beta2"])


if __name__ == "__main__":
    # Small shapes consistent with the module
    B, S, H = 2, 8, 32
    n_heads, head_dim, ff_dim = 4, 8, 64
    NHD = n_heads * head_dim

    key = jax.random.PRNGKey(0)
    ks = jax.random.split(key, 16)

    def init(k, shape, scale=0.1):
        return jax.random.normal(k, shape, dtype=jnp.float32) * scale

    params = {
        "wq": init(ks[0], (H, NHD)),    "bq": init(ks[1], (1, NHD)),
        "wk": init(ks[2], (H, NHD)),    "bk": init(ks[3], (1, NHD)),
        "wv": init(ks[4], (H, NHD)),    "bv": init(ks[5], (1, NHD)),
        "wo": init(ks[6], (NHD, H)),    "bo": init(ks[7], (1, H)),
        "w1": init(ks[8], (H, ff_dim)), "b1": init(ks[9], (1, ff_dim)),
        "w2": init(ks[10], (ff_dim, H)), "b2": init(ks[11], (1, H)),
        # LayerNorm params (torch default: weight=1, bias=0)
        "g1": jnp.ones((1, H), jnp.float32), "beta1": jnp.zeros((1, H), jnp.float32),
        "g2": jnp.ones((1, H), jnp.float32), "beta2": jnp.zeros((1, H), jnp.float32),
    }

    x = jax.random.normal(ks[12], (B, S, H), dtype=jnp.float32)
    # boolean attention mask: mask out the last 2 key positions
    mask_bool = jnp.zeros((B, S, S), dtype=bool).at[:, :, -2:].set(True)
    attn_mask = mask_bool.astype(jnp.int32)

    out = encoder_layer(x, attn_mask, params, n_heads=n_heads, head_dim=head_dim)
    out = jax.block_until_ready(out)

    ref = encoder_layer_ref(x, attn_mask, params, n_heads=n_heads, head_dim=head_dim)
    # bf16 MXU operands + approx reciprocal -> slightly looser tolerance than f32
    np.testing.assert_allclose(np.asarray(out), np.asarray(ref), rtol=2e-2, atol=2e-2)

    print("KERNEL_OK")
</pallas_src>

<mosaic_0001>
module attributes {stable_mosaic.version = 11 : i64} {
  func.func @_encoder_layer_kernel(%arg0: i32, %arg1: memref<2x8x32xf32, #tpu.memory_space<vmem>>, %arg2: memref<2x8x8xi32, #tpu.memory_space<vmem>>, %arg3: memref<32x32xbf16, #tpu.memory_space<vmem>>, %arg4: memref<1x32xf32, #tpu.memory_space<vmem>>, %arg5: memref<32x32xbf16, #tpu.memory_space<vmem>>, %arg6: memref<1x32xf32, #tpu.memory_space<vmem>>, %arg7: memref<32x32xbf16, #tpu.memory_space<vmem>>, %arg8: memref<1x32xf32, #tpu.memory_space<vmem>>, %arg9: memref<32x32xbf16, #tpu.memory_space<vmem>>, %arg10: memref<1x32xf32, #tpu.memory_space<vmem>>, %arg11: memref<1x32xf32, #tpu.memory_space<vmem>>, %arg12: memref<1x32xf32, #tpu.memory_space<vmem>>, %arg13: memref<32x64xbf16, #tpu.memory_space<vmem>>, %arg14: memref<1x64xf32, #tpu.memory_space<vmem>>, %arg15: memref<64x32xbf16, #tpu.memory_space<vmem>>, %arg16: memref<1x32xf32, #tpu.memory_space<vmem>>, %arg17: memref<1x32xf32, #tpu.memory_space<vmem>>, %arg18: memref<1x32xf32, #tpu.memory_space<vmem>>, %arg19: memref<2x8x32xf32, #tpu.memory_space<vmem>>) attributes {dimension_semantics = [#tpu.dimension_semantics<parallel>], iteration_bounds = array<i64: 1>, scalar_prefetch = 0 : i64, scratch_operands = 0 : i64, tpu.core_type = #tpu.core_type<tc>, window_params = [{transform_indices = @transform_0, window_bounds = array<i64: 2, 8, 32>}, {transform_indices = @transform_1, window_bounds = array<i64: 2, 8, 8>}, {pipeline_mode = #tpu.pipeline_mode<synchronous>, transform_indices = @transform_2, window_bounds = array<i64: 32, 32>}, {pipeline_mode = #tpu.pipeline_mode<synchronous>, transform_indices = @transform_3, window_bounds = array<i64: 1, 32>}, {pipeline_mode = #tpu.pipeline_mode<synchronous>, transform_indices = @transform_4, window_bounds = array<i64: 32, 32>}, {pipeline_mode = #tpu.pipeline_mode<synchronous>, transform_indices = @transform_5, window_bounds = array<i64: 1, 32>}, {pipeline_mode = #tpu.pipeline_mode<synchronous>, transform_indices = @transform_6, window_bounds = array<i64: 32, 32>}, {pipeline_mode = #tpu.pipeline_mode<synchronous>, transform_indices = @transform_7, window_bounds = array<i64: 1, 32>}, {pipeline_mode = #tpu.pipeline_mode<synchronous>, transform_indices = @transform_8, window_bounds = array<i64: 32, 32>}, {pipeline_mode = #tpu.pipeline_mode<synchronous>, transform_indices = @transform_9, window_bounds = array<i64: 1, 32>}, {pipeline_mode = #tpu.pipeline_mode<synchronous>, transform_indices = @transform_10, window_bounds = array<i64: 1, 32>}, {pipeline_mode = #tpu.pipeline_mode<synchronous>, transform_indices = @transform_11, window_bounds = array<i64: 1, 32>}, {pipeline_mode = #tpu.pipeline_mode<synchronous>, transform_indices = @transform_12, window_bounds = array<i64: 32, 64>}, {pipeline_mode = #tpu.pipeline_mode<synchronous>, transform_indices = @transform_13, window_bounds = array<i64: 1, 64>}, {pipeline_mode = #tpu.pipeline_mode<synchronous>, transform_indices = @transform_14, window_bounds = array<i64: 64, 32>}, {pipeline_mode = #tpu.pipeline_mode<synchronous>, transform_indices = @transform_15, window_bounds = array<i64: 1, 32>}, {pipeline_mode = #tpu.pipeline_mode<synchronous>, transform_indices = @transform_16, window_bounds = array<i64: 1, 32>}, {pipeline_mode = #tpu.pipeline_mode<synchronous>, transform_indices = @transform_17, window_bounds = array<i64: 1, 32>}, {transform_indices = @transform_18, window_bounds = array<i64: 2, 8, 32>}]} {
    %c0 = arith.constant 0 : index
    %c0_0 = arith.constant 0 : index
    %c0_1 = arith.constant 0 : index
    %0 = vector.load %arg1[%c0, %c0_0, %c0_1] : memref<2x8x32xf32, #tpu.memory_space<vmem>>, vector<2x8x32xf32>
    %1 = vector.shape_cast %0 : vector<2x8x32xf32> to vector<16x32xf32>
    %2 = arith.truncf %1 : vector<16x32xf32> to vector<16x32xbf16>
    %c0_2 = arith.constant 0 : index
    %c0_3 = arith.constant 0 : index
    %3 = vector.load %arg3[%c0_2, %c0_3] : memref<32x32xbf16, #tpu.memory_space<vmem>>, vector<32x32xbf16>
    %cst = arith.constant dense<0.000000e+00> : vector<16x32xf32>
    %4 = tpu.matmul %2, %3, %cst {dimension_numbers = #tpu.dot_dimension_numbers<[1], [0], [0], [1], [0, 0, 1, 1], [], []>} : vector<16x32xbf16>, vector<32x32xbf16>, vector<16x32xf32> -> vector<16x32xf32>
    %c0_4 = arith.constant 0 : index
    %c0_5 = arith.constant 0 : index
    %5 = vector.load %arg4[%c0_4, %c0_5] : memref<1x32xf32, #tpu.memory_space<vmem>>, vector<1x32xf32>
    %6 = vector.broadcast %5 : vector<1x32xf32> to vector<16x32xf32>
    %7 = arith.addf %4, %6 : vector<16x32xf32>
    %c0_6 = arith.constant 0 : index
    %c0_7 = arith.constant 0 : index
    %8 = vector.load %arg5[%c0_6, %c0_7] : memref<32x32xbf16, #tpu.memory_space<vmem>>, vector<32x32xbf16>
    %cst_8 = arith.constant dense<0.000000e+00> : vector<16x32xf32>
    %9 = tpu.matmul %2, %8, %cst_8 {dimension_numbers = #tpu.dot_dimension_numbers<[1], [0], [0], [1], [0, 0, 1, 1], [], []>} : vector<16x32xbf16>, vector<32x32xbf16>, vector<16x32xf32> -> vector<16x32xf32>
    %c0_9 = arith.constant 0 : index
    %c0_10 = arith.constant 0 : index
    %10 = vector.load %arg6[%c0_9, %c0_10] : memref<1x32xf32, #tpu.memory_space<vmem>>, vector<1x32xf32>
    %11 = vector.broadcast %10 : vector<1x32xf32> to vector<16x32xf32>
    %12 = arith.addf %9, %11 : vector<16x32xf32>
    %c0_11 = arith.constant 0 : index
    %c0_12 = arith.constant 0 : index
    %13 = vector.load %arg7[%c0_11, %c0_12] : memref<32x32xbf16, #tpu.memory_space<vmem>>, vector<32x32xbf16>
    %cst_13 = arith.constant dense<0.000000e+00> : vector<16x32xf32>
    %14 = tpu.matmul %2, %13, %cst_13 {dimension_numbers = #tpu.dot_dimension_numbers<[1], [0], [0], [1], [0, 0, 1, 1], [], []>} : vector<16x32xbf16>, vector<32x32xbf16>, vector<16x32xf32> -> vector<16x32xf32>
    %c0_14 = arith.constant 0 : index
    %c0_15 = arith.constant 0 : index
    %15 = vector.load %arg8[%c0_14, %c0_15] : memref<1x32xf32, #tpu.memory_space<vmem>>, vector<1x32xf32>
    %16 = vector.broadcast %15 : vector<1x32xf32> to vector<16x32xf32>
    %17 = arith.addf %14, %16 : vector<16x32xf32>
    %cst_16 = arith.constant 0.353553385 : f32
    %18 = vector.broadcast %cst_16 : f32 to vector<16x32xf32>
    %19 = arith.mulf %7, %18 : vector<16x32xf32>
    %20 = arith.truncf %19 : vector<16x32xf32> to vector<16x32xbf16>
    %21 = vector.shape_cast %20 : vector<16x32xbf16> to vector<2x8x32xbf16>
    %22 = arith.truncf %12 : vector<16x32xf32> to vector<16x32xbf16>
    %23 = vector.shape_cast %22 : vector<16x32xbf16> to vector<2x8x32xbf16>
    %24 = arith.truncf %17 : vector<16x32xf32> to vector<16x32xbf16>
    %25 = vector.shape_cast %24 : vector<16x32xbf16> to vector<2x8x32xbf16>
    %c0_17 = arith.constant 0 : index
    %c0_18 = arith.constant 0 : index
    %c0_19 = arith.constant 0 : index
    %26 = vector.load %arg2[%c0_17, %c0_18, %c0_19] : memref<2x8x8xi32, #tpu.memory_space<vmem>>, vector<2x8x8xi32>
    %c0_i32 = arith.constant 0 : i32
    %27 = vector.broadcast %c0_i32 : i32 to vector<2x8x8xi32>
    %28 = arith.cmpi sgt, %26, %27 : vector<2x8x8xi32>
    %cst_20 = arith.constant -1.000000e+09 : f32
    %cst_21 = arith.constant 0.000000e+00 : f32
    %29 = vector.broadcast %cst_20 : f32 to vector<2x8x8xf32>
    %30 = vector.broadcast %cst_21 : f32 to vector<2x8x8xf32>
    %31 = arith.select %28, %29, %30 : vector<2x8x8xi1>, vector<2x8x8xf32>
    %32 = vector.extract_strided_slice %21 {offsets = [0, 0, 0], sizes = [2, 8, 8], strides = [1, 1, 1]} : vector<2x8x32xbf16> to vector<2x8x8xbf16>
    %33 = vector.extract_strided_slice %23 {offsets = [0, 0, 0], sizes = [2, 8, 8], strides = [1, 1, 1]} : vector<2x8x32xbf16> to vector<2x8x8xbf16>
    %34 = vector.extract_strided_slice %25 {offsets = [0, 0, 0], sizes = [2, 8, 8], strides = [1, 1, 1]} : vector<2x8x32xbf16> to vector<2x8x8xbf16>
    "tpu.trace_start"() <{level = 10 : i32, message = "bqd,bkd->bqk"}> : () -> ()
    %cst_22 = arith.constant dense<0.000000e+00> : vector<2x8x8xf32>
    %35 = tpu.matmul %32, %33, %cst_22 {dimension_numbers = #tpu.dot_dimension_numbers<[2], [2], [1], [1], [0, 0, 0, 1, 1, 1], [0], [0]>} : vector<2x8x8xbf16>, vector<2x8x8xbf16>, vector<2x8x8xf32> -> vector<2x8x8xf32>
    "tpu.trace_stop"() : () -> ()
    %36 = arith.addf %35, %31 : vector<2x8x8xf32>
    %cst_23 = arith.constant dense<0xFF800000> : vector<2x8xf32>
    %37 = vector.multi_reduction <maximumf>, %36, %cst_23 [2] : vector<2x8x8xf32> to vector<2x8xf32>
    %38 = vector.shape_cast %37 : vector<2x8xf32> to vector<2x8x1xf32>
    %39 = vector.broadcast %38 : vector<2x8x1xf32> to vector<2x8x8xf32>
    %40 = arith.subf %36, %39 : vector<2x8x8xf32>
    %41 = math.exp %40 : vector<2x8x8xf32>
    %cst_24 = arith.constant dense<0.000000e+00> : vector<2x8xf32>
    %42 = vector.multi_reduction <add>, %41, %cst_24 [2] : vector<2x8x8xf32> to vector<2x8xf32>
    %43 = vector.shape_cast %42 : vector<2x8xf32> to vector<2x8x1xf32>
    %44 = tpu.reciprocal %43 {approx = true} : vector<2x8x1xf32> -> vector<2x8x1xf32>
    %45 = vector.broadcast %44 : vector<2x8x1xf32> to vector<2x8x8xf32>
    %46 = arith.mulf %41, %45 : vector<2x8x8xf32>
    %47 = arith.truncf %46 : vector<2x8x8xf32> to vector<2x8x8xbf16>
    "tpu.trace_start"() <{level = 10 : i32, message = "bqk,bkd->bqd"}> : () -> ()
    %cst_25 = arith.constant dense<0.000000e+00> : vector<2x8x8xf32>
    %48 = tpu.matmul %47, %34, %cst_25 {dimension_numbers = #tpu.dot_dimension_numbers<[2], [1], [1], [2], [0, 0, 0, 1, 1, 2], [0], [0]>} : vector<2x8x8xbf16>, vector<2x8x8xbf16>, vector<2x8x8xf32> -> vector<2x8x8xf32>
    "tpu.trace_stop"() : () -> ()
    %49 = vector.extract_strided_slice %21 {offsets = [0, 0, 8], sizes = [2, 8, 8], strides = [1, 1, 1]} : vector<2x8x32xbf16> to vector<2x8x8xbf16>
    %50 = vector.extract_strided_slice %23 {offsets = [0, 0, 8], sizes = [2, 8, 8], strides = [1, 1, 1]} : vector<2x8x32xbf16> to vector<2x8x8xbf16>
    %51 = vector.extract_strided_slice %25 {offsets = [0, 0, 8], sizes = [2, 8, 8], strides = [1, 1, 1]} : vector<2x8x32xbf16> to vector<2x8x8xbf16>
    "tpu.trace_start"() <{level = 10 : i32, message = "bqd,bkd->bqk"}> : () -> ()
    %cst_26 = arith.constant dense<0.000000e+00> : vector<2x8x8xf32>
    %52 = tpu.matmul %49, %50, %cst_26 {dimension_numbers = #tpu.dot_dimension_numbers<[2], [2], [1], [1], [0, 0, 0, 1, 1, 1], [0], [0]>} : vector<2x8x8xbf16>, vector<2x8x8xbf16>, vector<2x8x8xf32> -> vector<2x8x8xf32>
    "tpu.trace_stop"() : () -> ()
    %53 = arith.addf %52, %31 : vector<2x8x8xf32>
    %cst_27 = arith.constant dense<0xFF800000> : vector<2x8xf32>
    %54 = vector.multi_reduction <maximumf>, %53, %cst_27 [2] : vector<2x8x8xf32> to vector<2x8xf32>
    %55 = vector.shape_cast %54 : vector<2x8xf32> to vector<2x8x1xf32>
    %56 = vector.broadcast %55 : vector<2x8x1xf32> to vector<2x8x8xf32>
    %57 = arith.subf %53, %56 : vector<2x8x8xf32>
    %58 = math.exp %57 : vector<2x8x8xf32>
    %cst_28 = arith.constant dense<0.000000e+00> : vector<2x8xf32>
    %59 = vector.multi_reduction <add>, %58, %cst_28 [2] : vector<2x8x8xf32> to vector<2x8xf32>
    %60 = vector.shape_cast %59 : vector<2x8xf32> to vector<2x8x1xf32>
    %61 = tpu.reciprocal %60 {approx = true} : vector<2x8x1xf32> -> vector<2x8x1xf32>
    %62 = vector.broadcast %61 : vector<2x8x1xf32> to vector<2x8x8xf32>
    %63 = arith.mulf %58, %62 : vector<2x8x8xf32>
    %64 = arith.truncf %63 : vector<2x8x8xf32> to vector<2x8x8xbf16>
    "tpu.trace_start"() <{level = 10 : i32, message = "bqk,bkd->bqd"}> : () -> ()
    %cst_29 = arith.constant dense<0.000000e+00> : vector<2x8x8xf32>
    %65 = tpu.matmul %64, %51, %cst_29 {dimension_numbers = #tpu.dot_dimension_numbers<[2], [1], [1], [2], [0, 0, 0, 1, 1, 2], [0], [0]>} : vector<2x8x8xbf16>, vector<2x8x8xbf16>, vector<2x8x8xf32> -> vector<2x8x8xf32>
    "tpu.trace_stop"() : () -> ()
    %66 = vector.extract_strided_slice %21 {offsets = [0, 0, 16], sizes = [2, 8, 8], strides = [1, 1, 1]} : vector<2x8x32xbf16> to vector<2x8x8xbf16>
    %67 = vector.extract_strided_slice %23 {offsets = [0, 0, 16], sizes = [2, 8, 8], strides = [1, 1, 1]} : vector<2x8x32xbf16> to vector<2x8x8xbf16>
    %68 = vector.extract_strided_slice %25 {offsets = [0, 0, 16], sizes = [2, 8, 8], strides = [1, 1, 1]} : vector<2x8x32xbf16> to vector<2x8x8xbf16>
    "tpu.trace_start"() <{level = 10 : i32, message = "bqd,bkd->bqk"}> : () -> ()
    %cst_30 = arith.constant dense<0.000000e+00> : vector<2x8x8xf32>
    %69 = tpu.matmul %66, %67, %cst_30 {dimension_numbers = #tpu.dot_dimension_numbers<[2], [2], [1], [1], [0, 0, 0, 1, 1, 1], [0], [0]>} : vector<2x8x8xbf16>, vector<2x8x8xbf16>, vector<2x8x8xf32> -> vector<2x8x8xf32>
    "tpu.trace_stop"() : () -> ()
    %70 = arith.addf %69, %31 : vector<2x8x8xf32>
    %cst_31 = arith.constant dense<0xFF800000> : vector<2x8xf32>
    %71 = vector.multi_reduction <maximumf>, %70, %cst_31 [2] : vector<2x8x8xf32> to vector<2x8xf32>
    %72 = vector.shape_cast %71 : vector<2x8xf32> to vector<2x8x1xf32>
    %73 = vector.broadcast %72 : vector<2x8x1xf32> to vector<2x8x8xf32>
    %74 = arith.subf %70, %73 : vector<2x8x8xf32>
    %75 = math.exp %74 : vector<2x8x8xf32>
    %cst_32 = arith.constant dense<0.000000e+00> : vector<2x8xf32>
    %76 = vector.multi_reduction <add>, %75, %cst_32 [2] : vector<2x8x8xf32> to vector<2x8xf32>
    %77 = vector.shape_cast %76 : vector<2x8xf32> to vector<2x8x1xf32>
    %78 = tpu.reciprocal %77 {approx = true} : vector<2x8x1xf32> -> vector<2x8x1xf32>
    %79 = vector.broadcast %78 : vector<2x8x1xf32> to vector<2x8x8xf32>
    %80 = arith.mulf %75, %79 : vector<2x8x8xf32>
    %81 = arith.truncf %80 : vector<2x8x8xf32> to vector<2x8x8xbf16>
    "tpu.trace_start"() <{level = 10 : i32, message = "bqk,bkd->bqd"}> : () -> ()
    %cst_33 = arith.constant dense<0.000000e+00> : vector<2x8x8xf32>
    %82 = tpu.matmul %81, %68, %cst_33 {dimension_numbers = #tpu.dot_dimension_numbers<[2], [1], [1], [2], [0, 0, 0, 1, 1, 2], [0], [0]>} : vector<2x8x8xbf16>, vector<2x8x8xbf16>, vector<2x8x8xf32> -> vector<2x8x8xf32>
    "tpu.trace_stop"() : () -> ()
    %83 = vector.extract_strided_slice %21 {offsets = [0, 0, 24], sizes = [2, 8, 8], strides = [1, 1, 1]} : vector<2x8x32xbf16> to vector<2x8x8xbf16>
    %84 = vector.extract_strided_slice %23 {offsets = [0, 0, 24], sizes = [2, 8, 8], strides = [1, 1, 1]} : vector<2x8x32xbf16> to vector<2x8x8xbf16>
    %85 = vector.extract_strided_slice %25 {offsets = [0, 0, 24], sizes = [2, 8, 8], strides = [1, 1, 1]} : vector<2x8x32xbf16> to vector<2x8x8xbf16>
    "tpu.trace_start"() <{level = 10 : i32, message = "bqd,bkd->bqk"}> : () -> ()
    %cst_34 = arith.constant dense<0.000000e+00> : vector<2x8x8xf32>
    %86 = tpu.matmul %83, %84, %cst_34 {dimension_numbers = #tpu.dot_dimension_numbers<[2], [2], [1], [1], [0, 0, 0, 1, 1, 1], [0], [0]>} : vector<2x8x8xbf16>, vector<2x8x8xbf16>, vector<2x8x8xf32> -> vector<2x8x8xf32>
    "tpu.trace_stop"() : () -> ()
    %87 = arith.addf %86, %31 : vector<2x8x8xf32>
    %cst_35 = arith.constant dense<0xFF800000> : vector<2x8xf32>
    %88 = vector.multi_reduction <maximumf>, %87, %cst_35 [2] : vector<2x8x8xf32> to vector<2x8xf32>
    %89 = vector.shape_cast %88 : vector<2x8xf32> to vector<2x8x1xf32>
    %90 = vector.broadcast %89 : vector<2x8x1xf32> to vector<2x8x8xf32>
    %91 = arith.subf %87, %90 : vector<2x8x8xf32>
    %92 = math.exp %91 : vector<2x8x8xf32>
    %cst_36 = arith.constant dense<0.000000e+00> : vector<2x8xf32>
    %93 = vector.multi_reduction <add>, %92, %cst_36 [2] : vector<2x8x8xf32> to vector<2x8xf32>
    %94 = vector.shape_cast %93 : vector<2x8xf32> to vector<2x8x1xf32>
    %95 = tpu.reciprocal %94 {approx = true} : vector<2x8x1xf32> -> vector<2x8x1xf32>
    %96 = vector.broadcast %95 : vector<2x8x1xf32> to vector<2x8x8xf32>
    %97 = arith.mulf %92, %96 : vector<2x8x8xf32>
    %98 = arith.truncf %97 : vector<2x8x8xf32> to vector<2x8x8xbf16>
    "tpu.trace_start"() <{level = 10 : i32, message = "bqk,bkd->bqd"}> : () -> ()
    %cst_37 = arith.constant dense<0.000000e+00> : vector<2x8x8xf32>
    %99 = tpu.matmul %98, %85, %cst_37 {dimension_numbers = #tpu.dot_dimension_numbers<[2], [1], [1], [2], [0, 0, 0, 1, 1, 2], [0], [0]>} : vector<2x8x8xbf16>, vector<2x8x8xbf16>, vector<2x8x8xf32> -> vector<2x8x8xf32>
    "tpu.trace_stop"() : () -> ()
    %100 = tpu.concatenate %48, %65, %82, %99 in 2 : vector<2x8x8xf32>, vector<2x8x8xf32>, vector<2x8x8xf32>, vector<2x8x8xf32> -> vector<2x8x32xf32>
    %101 = vector.shape_cast %100 : vector<2x8x32xf32> to vector<16x32xf32>
    %102 = arith.truncf %101 : vector<16x32xf32> to vector<16x32xbf16>
    %c0_38 = arith.constant 0 : index
    %c0_39 = arith.constant 0 : index
    %103 = vector.load %arg9[%c0_38, %c0_39] : memref<32x32xbf16, #tpu.memory_space<vmem>>, vector<32x32xbf16>
    %cst_40 = arith.constant dense<0.000000e+00> : vector<16x32xf32>
    %104 = tpu.matmul %102, %103, %cst_40 {dimension_numbers = #tpu.dot_dimension_numbers<[1], [0], [0], [1], [0, 0, 1, 1], [], []>} : vector<16x32xbf16>, vector<32x32xbf16>, vector<16x32xf32> -> vector<16x32xf32>
    %c0_41 = arith.constant 0 : index
    %c0_42 = arith.constant 0 : index
    %105 = vector.load %arg10[%c0_41, %c0_42] : memref<1x32xf32, #tpu.memory_space<vmem>>, vector<1x32xf32>
    %106 = vector.broadcast %105 : vector<1x32xf32> to vector<16x32xf32>
    %107 = arith.addf %104, %106 : vector<16x32xf32>
    %108 = arith.addf %1, %107 : vector<16x32xf32>
    %cst_43 = arith.constant dense<0.000000e+00> : vector<16xf32>
    %109 = vector.multi_reduction <add>, %108, %cst_43 [1] : vector<16x32xf32> to vector<16xf32>
    %110 = vector.shape_cast %109 : vector<16xf32> to vector<16x1xf32>
    %cst_44 = arith.constant 3.200000e+01 : f32
    %111 = vector.broadcast %cst_44 : f32 to vector<16x1xf32>
    %112 = arith.divf %110, %111 : vector<16x1xf32>
    %113 = vector.broadcast %112 : vector<16x1xf32> to vector<16x32xf32>
    %114 = arith.subf %108, %113 : vector<16x32xf32>
    %115 = arith.mulf %114, %114 : vector<16x32xf32>
    %cst_45 = arith.constant dense<0.000000e+00> : vector<16xf32>
    %116 = vector.multi_reduction <add>, %115, %cst_45 [1] : vector<16x32xf32> to vector<16xf32>
    %117 = vector.shape_cast %116 : vector<16xf32> to vector<16x1xf32>
    %cst_46 = arith.constant 3.200000e+01 : f32
    %118 = vector.broadcast %cst_46 : f32 to vector<16x1xf32>
    %119 = arith.divf %117, %118 : vector<16x1xf32>
    %120 = vector.broadcast %112 : vector<16x1xf32> to vector<16x32xf32>
    %121 = arith.subf %108, %120 : vector<16x32xf32>
    %cst_47 = arith.constant 9.99999996E-13 : f32
    %122 = vector.broadcast %cst_47 : f32 to vector<16x1xf32>
    %123 = arith.addf %119, %122 : vector<16x1xf32>
    %124 = math.rsqrt %123 : vector<16x1xf32>
    %125 = vector.broadcast %124 : vector<16x1xf32> to vector<16x32xf32>
    %126 = arith.mulf %121, %125 : vector<16x32xf32>
    %c0_48 = arith.constant 0 : index
    %c0_49 = arith.constant 0 : index
    %127 = vector.load %arg11[%c0_48, %c0_49] : memref<1x32xf32, #tpu.memory_space<vmem>>, vector<1x32xf32>
    %128 = vector.broadcast %127 : vector<1x32xf32> to vector<16x32xf32>
    %129 = arith.mulf %126, %128 : vector<16x32xf32>
    %c0_50 = arith.constant 0 : index
    %c0_51 = arith.constant 0 : index
    %130 = vector.load %arg12[%c0_50, %c0_51] : memref<1x32xf32, #tpu.memory_space<vmem>>, vector<1x32xf32>
    %131 = vector.broadcast %130 : vector<1x32xf32> to vector<16x32xf32>
    %132 = arith.addf %129, %131 : vector<16x32xf32>
    %133 = arith.truncf %132 : vector<16x32xf32> to vector<16x32xbf16>
    %c0_52 = arith.constant 0 : index
    %c0_53 = arith.constant 0 : index
    %134 = vector.load %arg13[%c0_52, %c0_53] : memref<32x64xbf16, #tpu.memory_space<vmem>>, vector<32x64xbf16>
    %cst_54 = arith.constant dense<0.000000e+00> : vector<16x64xf32>
    %135 = tpu.matmul %133, %134, %cst_54 {dimension_numbers = #tpu.dot_dimension_numbers<[1], [0], [0], [1], [0, 0, 1, 1], [], []>} : vector<16x32xbf16>, vector<32x64xbf16>, vector<16x64xf32> -> vector<16x64xf32>
    %c0_55 = arith.constant 0 : index
    %c0_56 = arith.constant 0 : index
    %136 = vector.load %arg14[%c0_55, %c0_56] : memref<1x64xf32, #tpu.memory_space<vmem>>, vector<1x64xf32>
    %137 = vector.broadcast %136 : vector<1x64xf32> to vector<16x64xf32>
    %138 = arith.addf %135, %137 : vector<16x64xf32>
    %cst_57 = arith.constant 0.000000e+00 : f32
    %139 = vector.broadcast %cst_57 : f32 to vector<16x64xf32>
    %140 = arith.maximumf %138, %139 : vector<16x64xf32>
    %141 = arith.truncf %140 : vector<16x64xf32> to vector<16x64xbf16>
    %c0_58 = arith.constant 0 : index
    %c0_59 = arith.constant 0 : index
    %142 = vector.load %arg15[%c0_58, %c0_59] : memref<64x32xbf16, #tpu.memory_space<vmem>>, vector<64x32xbf16>
    %cst_60 = arith.constant dense<0.000000e+00> : vector<16x32xf32>
    %143 = tpu.matmul %141, %142, %cst_60 {dimension_numbers = #tpu.dot_dimension_numbers<[1], [0], [0], [1], [0, 0, 1, 1], [], []>} : vector<16x64xbf16>, vector<64x32xbf16>, vector<16x32xf32> -> vector<16x32xf32>
    %c0_61 = arith.constant 0 : index
    %c0_62 = arith.constant 0 : index
    %144 = vector.load %arg16[%c0_61, %c0_62] : memref<1x32xf32, #tpu.memory_space<vmem>>, vector<1x32xf32>
    %145 = vector.broadcast %144 : vector<1x32xf32> to vector<16x32xf32>
    %146 = arith.addf %143, %145 : vector<16x32xf32>
    %147 = arith.addf %146, %132 : vector<16x32xf32>
    %cst_63 = arith.constant dense<0.000000e+00> : vector<16xf32>
    %148 = vector.multi_reduction <add>, %147, %cst_63 [1] : vector<16x32xf32> to vector<16xf32>
    %149 = vector.shape_cast %148 : vector<16xf32> to vector<16x1xf32>
    %cst_64 = arith.constant 3.200000e+01 : f32
    %150 = vector.broadcast %cst_64 : f32 to vector<16x1xf32>
    %151 = arith.divf %149, %150 : vector<16x1xf32>
    %152 = vector.broadcast %151 : vector<16x1xf32> to vector<16x32xf32>
    %153 = arith.subf %147, %152 : vector<16x32xf32>
    %154 = arith.mulf %153, %153 : vector<16x32xf32>
    %cst_65 = arith.constant dense<0.000000e+00> : vector<16xf32>
    %155 = vector.multi_reduction <add>, %154, %cst_65 [1] : vector<16x32xf32> to vector<16xf32>
    %156 = vector.shape_cast %155 : vector<16xf32> to vector<16x1xf32>
    %cst_66 = arith.constant 3.200000e+01 : f32
    %157 = vector.broadcast %cst_66 : f32 to vector<16x1xf32>
    %158 = arith.divf %156, %157 : vector<16x1xf32>
    %159 = vector.broadcast %151 : vector<16x1xf32> to vector<16x32xf32>
    %160 = arith.subf %147, %159 : vector<16x32xf32>
    %cst_67 = arith.constant 9.99999996E-13 : f32
    %161 = vector.broadcast %cst_67 : f32 to vector<16x1xf32>
    %162 = arith.addf %158, %161 : vector<16x1xf32>
    %163 = math.rsqrt %162 : vector<16x1xf32>
    %164 = vector.broadcast %163 : vector<16x1xf32> to vector<16x32xf32>
    %165 = arith.mulf %160, %164 : vector<16x32xf32>
    %c0_68 = arith.constant 0 : index
    %c0_69 = arith.constant 0 : index
    %166 = vector.load %arg17[%c0_68, %c0_69] : memref<1x32xf32, #tpu.memory_space<vmem>>, vector<1x32xf32>
    %167 = vector.broadcast %166 : vector<1x32xf32> to vector<16x32xf32>
    %168 = arith.mulf %165, %167 : vector<16x32xf32>
    %c0_70 = arith.constant 0 : index
    %c0_71 = arith.constant 0 : index
    %169 = vector.load %arg18[%c0_70, %c0_71] : memref<1x32xf32, #tpu.memory_space<vmem>>, vector<1x32xf32>
    %170 = vector.broadcast %169 : vector<1x32xf32> to vector<16x32xf32>
    %171 = arith.addf %168, %170 : vector<16x32xf32>
    %172 = vector.shape_cast %171 : vector<16x32xf32> to vector<2x8x32xf32>
    %c0_72 = arith.constant 0 : index
    %c0_73 = arith.constant 0 : index
    %c0_74 = arith.constant 0 : index
    %173 = vector.load %arg19[%c0_72, %c0_73, %c0_74] : memref<2x8x32xf32, #tpu.memory_space<vmem>>, vector<2x8x32xf32>
    tpu.vector_store %arg19[%c0_72, %c0_73, %c0_74], %172 {strides = array<i32>} : memref<2x8x32xf32, #tpu.memory_space<vmem>>, vector<2x8x32xf32>,
    return
  }
  func.func @transform_0(%arg0: i32) -> (i32, i32, i32) {
    %c0_i32 = arith.constant 0 : i32
    %c0_i32_0 = arith.constant 0 : i32
    %c0_i32_1 = arith.constant 0 : i32
    return %arg0, %c0_i32, %c0_i32_0 : i32, i32, i32
  }
  func.func @transform_1(%arg0: i32) -> (i32, i32, i32) {
    %c0_i32 = arith.constant 0 : i32
    %c0_i32_0 = arith.constant 0 : i32
    %c0_i32_1 = arith.constant 0 : i32
    return %arg0, %c0_i32, %c0_i32_0 : i32, i32, i32
  }
  func.func @transform_2(%arg0: i32) -> (i32, i32) {
    %c0_i32 = arith.constant 0 : i32
    %c0_i32_0 = arith.constant 0 : i32
    %c0_i32_1 = arith.constant 0 : i32
    return %c0_i32, %c0_i32_0 : i32, i32
  }
  func.func @transform_3(%arg0: i32) -> (i32, i32) {
    %c0_i32 = arith.constant 0 : i32
    %c0_i32_0 = arith.constant 0 : i32
    %c0_i32_1 = arith.constant 0 : i32
    return %c0_i32, %c0_i32_0 : i32, i32
  }
  func.func @transform_4(%arg0: i32) -> (i32, i32) {
    %c0_i32 = arith.constant 0 : i32
    %c0_i32_0 = arith.constant 0 : i32
    %c0_i32_1 = arith.constant 0 : i32
    return %c0_i32, %c0_i32_0 : i32, i32
  }
  func.func @transform_5(%arg0: i32) -> (i32, i32) {
    %c0_i32 = arith.constant 0 : i32
    %c0_i32_0 = arith.constant 0 : i32
    %c0_i32_1 = arith.constant 0 : i32
    return %c0_i32, %c0_i32_0 : i32, i32
  }
  func.func @transform_6(%arg0: i32) -> (i32, i32) {
    %c0_i32 = arith.constant 0 : i32
    %c0_i32_0 = arith.constant 0 : i32
    %c0_i32_1 = arith.constant 0 : i32
    return %c0_i32, %c0_i32_0 : i32, i32
  }
  func.func @transform_7(%arg0: i32) -> (i32, i32) {
    %c0_i32 = arith.constant 0 : i32
    %c0_i32_0 = arith.constant 0 : i32
    %c0_i32_1 = arith.constant 0 : i32
    return %c0_i32, %c0_i32_0 : i32, i32
  }
  func.func @transform_8(%arg0: i32) -> (i32, i32) {
    %c0_i32 = arith.constant 0 : i32
    %c0_i32_0 = arith.constant 0 : i32
    %c0_i32_1 = arith.constant 0 : i32
    return %c0_i32, %c0_i32_0 : i32, i32
  }
  func.func @transform_9(%arg0: i32) -> (i32, i32) {
    %c0_i32 = arith.constant 0 : i32
    %c0_i32_0 = arith.constant 0 : i32
    %c0_i32_1 = arith.constant 0 : i32
    return %c0_i32, %c0_i32_0 : i32, i32
  }
  func.func @transform_10(%arg0: i32) -> (i32, i32) {
    %c0_i32 = arith.constant 0 : i32
    %c0_i32_0 = arith.constant 0 : i32
    %c0_i32_1 = arith.constant 0 : i32
    return %c0_i32, %c0_i32_0 : i32, i32
  }
  func.func @transform_11(%arg0: i32) -> (i32, i32) {
    %c0_i32 = arith.constant 0 : i32
    %c0_i32_0 = arith.constant 0 : i32
    %c0_i32_1 = arith.constant 0 : i32
    return %c0_i32, %c0_i32_0 : i32, i32
  }
  func.func @transform_12(%arg0: i32) -> (i32, i32) {
    %c0_i32 = arith.constant 0 : i32
    %c0_i32_0 = arith.constant 0 : i32
    %c0_i32_1 = arith.constant 0 : i32
    return %c0_i32, %c0_i32_0 : i32, i32
  }
  func.func @transform_13(%arg0: i32) -> (i32, i32) {
    %c0_i32 = arith.constant 0 : i32
    %c0_i32_0 = arith.constant 0 : i32
    %c0_i32_1 = arith.constant 0 : i32
    return %c0_i32, %c0_i32_0 : i32, i32
  }
  func.func @transform_14(%arg0: i32) -> (i32, i32) {
    %c0_i32 = arith.constant 0 : i32
    %c0_i32_0 = arith.constant 0 : i32
    %c0_i32_1 = arith.constant 0 : i32
    return %c0_i32, %c0_i32_0 : i32, i32
  }
  func.func @transform_15(%arg0: i32) -> (i32, i32) {
    %c0_i32 = arith.constant 0 : i32
    %c0_i32_0 = arith.constant 0 : i32
    %c0_i32_1 = arith.constant 0 : i32
    return %c0_i32, %c0_i32_0 : i32, i32
  }
  func.func @transform_16(%arg0: i32) -> (i32, i32) {
    %c0_i32 = arith.constant 0 : i32
    %c0_i32_0 = arith.constant 0 : i32
    %c0_i32_1 = arith.constant 0 : i32
    return %c0_i32, %c0_i32_0 : i32, i32
  }
  func.func @transform_17(%arg0: i32) -> (i32, i32) {
    %c0_i32 = arith.constant 0 : i32
    %c0_i32_0 = arith.constant 0 : i32
    %c0_i32_1 = arith.constant 0 : i32
    return %c0_i32, %c0_i32_0 : i32, i32
  }
  func.func @transform_18(%arg0: i32) -> (i32, i32, i32) {
    %c0_i32 = arith.constant 0 : i32
    %c0_i32_0 = arith.constant 0 : i32
    %c0_i32_1 = arith.constant 0 : i32
    return %arg0, %c0_i32, %c0_i32_0 : i32, i32, i32
  }
}

</mosaic_0001>

<llo_original>
// kernel: tpu_custom_call.1
$region0: #{tpu_custom_call.1}
  #allocation0 [shape = 'u32[]', space=smem, size = 0x4, offset = 0x4, fixed_abs, tag = 'smem constant byte address 0x4 - core index']
  #allocation1 [shape = 'u32[144,128]{1,0:T(1,128)}', space=vmem, size = 0x12000, scoped, tag = 'internal scratch']
  %s0 = inlined_call_operand.vmem [shape: f32[2,8,32], index: 0, kind: input, shape index: {}]
  %s1 = inlined_call_operand.vmem [shape: s32[2,8,8], index: 1, kind: input, shape index: {}]
  %s2 = inlined_call_operand.vmem [shape: bf16[32,32], index: 2, kind: input, shape index: {}]
  %s3 = inlined_call_operand.hbm [shape: f32[1,32], index: 3, kind: input, shape index: {}]
  %s4 = inlined_call_operand.hbm [shape: bf16[32,32], index: 4, kind: input, shape index: {}]
  %s5 = inlined_call_operand.hbm [shape: f32[1,32], index: 5, kind: input, shape index: {}]
  %s6 = inlined_call_operand.hbm [shape: bf16[32,32], index: 6, kind: input, shape index: {}]
  %s7 = inlined_call_operand.hbm [shape: f32[1,32], index: 7, kind: input, shape index: {}]
  %s8 = inlined_call_operand.hbm [shape: bf16[32,32], index: 8, kind: input, shape index: {}]
  %s9 = inlined_call_operand.hbm [shape: f32[1,32], index: 9, kind: input, shape index: {}]
  %s10 = inlined_call_operand.vmem [shape: f32[1,32], index: 10, kind: input, shape index: {}]
  %s11 = inlined_call_operand.vmem [shape: f32[1,32], index: 11, kind: input, shape index: {}]
  %s12 = inlined_call_operand.vmem [shape: bf16[32,64], index: 12, kind: input, shape index: {}]
  %s13 = inlined_call_operand.vmem [shape: f32[1,64], index: 13, kind: input, shape index: {}]
  %s14 = inlined_call_operand.vmem [shape: bf16[64,32], index: 14, kind: input, shape index: {}]
  %s15 = inlined_call_operand.vmem [shape: f32[1,32], index: 15, kind: input, shape index: {}]
  %s16 = inlined_call_operand.vmem [shape: f32[1,32], index: 16, kind: input, shape index: {}]
  %s17 = inlined_call_operand.vmem [shape: f32[1,32], index: 17, kind: input, shape index: {}]
  %s18 = inlined_call_operand.hbm [shape: f32[2,8,32], index: 18, kind: output, shape index: {}]
  %s19 = sld [smem:[#allocation0]]
  $region110: #{tpu_custom_call.1} parent=0
    _
  %s21 = ssub.s32 1, %s19
  %s22 = scalar_select 0, %s21, %s19
  $region1: #{tpu_custom_call.1} parent=0
    #allocation2 [shape = 'u8[512]{0}', space=vmem, size = 0x400, scoped, tag = 'input window, operand 3, single buffered']
    #allocation3 [shape = 's32[1]{0}', space=sflag, size = 0x4, scoped, tag = 'scoped memory for tpu_custom_call.1']
    #allocation4 [shape = 's32[1]{0}', space=sflag, size = 0x4, scoped, tag = 'scoped memory for tpu_custom_call.1']
    #allocation5 [shape = 'u8[8192]{0}', space=vmem, size = 0x2000, scoped, tag = 'input window, operand 4, single buffered']
    #allocation6 [shape = 's32[1]{0}', space=sflag, size = 0x4, scoped, tag = 'scoped memory for tpu_custom_call.1']
    #allocation7 [shape = 'u8[512]{0}', space=vmem, size = 0x400, scoped, tag = 'input window, operand 5, single buffered']
    #allocation8 [shape = 'u8[8192]{0}', space=vmem, size = 0x2000, scoped, tag = 'input window, operand 6, single buffered']
    #allocation9 [shape = 's32[1]{0}', space=sflag, size = 0x4, scoped, tag = 'scoped memory for tpu_custom_call.1']
    #allocation10 [shape = 'u8[512]{0}', space=vmem, size = 0x400, scoped, tag = 'input window, operand 7, single buffered']
    #allocation11 [shape = 'u8[8192]{0}', space=vmem, size = 0x2000, scoped, tag = 'input window, operand 8, single buffered']
    #allocation12 [shape = 's32[1]{0}', space=sflag, size = 0x4, scoped, tag = 'scoped memory for tpu_custom_call.1']
    #allocation13 [shape = 'u8[512]{0}', space=vmem, size = 0x400, scoped, tag = 'input window, operand 9, single buffered']
    #allocation14 [shape = 'u8[8192]{0}', space=vmem, size = 0x2000, scoped, tag = 'output window, operand 0, single buffered']
    %23 = vsyncpa [#allocation3], 0
    %24 = vsyncpa [#allocation6], 0
    %25 = vsyncpa [#allocation9], 0
    %26 = vsyncpa [#allocation12], 0
    %27 = vsyncpa [#allocation4], 0
    // Predicated region
    $region2: #{tpu_custom_call.1} parent=1 // pred_check
      _
    $region3: #{tpu_custom_call.1} parent=1 // pred_check_branch
      %29 = sbr.rel (0) target = $region5
    $region4: #{tpu_custom_call.1} parent=1 // pred_region
      _
    $region5: #{tpu_custom_call.1} parent=1 // pred_fallthru
      _
    // Predicated region
    $region6: #{tpu_custom_call.1} parent=1 // pred_check
      _
    $region7: #{tpu_custom_call.1} parent=1 // pred_check_branch
      %31 = sbr.rel (0) target = $region9
    $region8: #{tpu_custom_call.1} parent=1 // pred_region
      _
    $region9: #{tpu_custom_call.1} parent=1 // pred_fallthru
      _
    // Predicated region
    $region10: #{tpu_custom_call.1} parent=1 // pred_check
      _
    $region11: #{tpu_custom_call.1} parent=1 // pred_check_branch
      %33 = sbr.rel (0) target = $region13
    $region12: #{tpu_custom_call.1} parent=1 // pred_region
      _
    $region13: #{tpu_custom_call.1} parent=1 // pred_fallthru
      _
    // Predicated region
    $region14: #{tpu_custom_call.1} parent=1 // pred_check
      _
    $region15: #{tpu_custom_call.1} parent=1 // pred_check_branch
      %35 = sbr.rel (0) target = $region17
    $region16: #{tpu_custom_call.1} parent=1 // pred_region
      %s37 = ssub.s32 16, 16
      %38 = vsyncadd [#allocation3], %s37
      %s40 = sshll.u32 [#allocation2], 4
      %s41 = int_to_ptr.vmem [resolvable:$true] %s40
      %43 = dma.hbm_to_vmem [thread:$0]  %s3, 16, %s41, [#allocation3]
    $region17: #{tpu_custom_call.1} parent=1 // pred_fallthru
      _
    // Predicated region
    $region18: #{tpu_custom_call.1} parent=1 // pred_check
      _
    $region19: #{tpu_custom_call.1} parent=1 // pred_check_branch
      %45 = sbr.rel (0) target = $region21
    $region20: #{tpu_custom_call.1} parent=1 // pred_region
      %s47 = ssub.s32 256, 256
      %48 = vsyncadd [#allocation6], %s47
      %s49 = sshll.u32 [#allocation5], 4
      %s50 = int_to_ptr.vmem [resolvable:$true] %s49
      %55 = dma.hbm_to_vmem [thread:$0]  %s4, 256, %s50, [#allocation6], 64, 64, 4
    $region21: #{tpu_custom_call.1} parent=1 // pred_fallthru
      _
    // Predicated region
    $region22: #{tpu_custom_call.1} parent=1 // pred_check
      _
    $region23: #{tpu_custom_call.1} parent=1 // pred_check_branch
      %57 = sbr.rel (0) target = $region25
    $region24: #{tpu_custom_call.1} parent=1 // pred_region
      %s59 = ssub.s32 16, 16
      %60 = vsyncadd [#allocation6], %s59
      %s62 = sshll.u32 [#allocation7], 4
      %s63 = int_to_ptr.vmem [resolvable:$true] %s62
      %65 = dma.hbm_to_vmem [thread:$0]  %s5, 16, %s63, [#allocation6]
    $region25: #{tpu_custom_call.1} parent=1 // pred_fallthru
      _
    // Predicated region
    $region26: #{tpu_custom_call.1} parent=1 // pred_check
      _
    $region27: #{tpu_custom_call.1} parent=1 // pred_check_branch
      %67 = sbr.rel (0) target = $region29
    $region28: #{tpu_custom_call.1} parent=1 // pred_region
      %s69 = ssub.s32 256, 256
      %70 = vsyncadd [#allocation9], %s69
      %s71 = sshll.u32 [#allocation8], 4
      %s72 = int_to_ptr.vmem [resolvable:$true] %s71
      %77 = dma.hbm_to_vmem [thread:$0]  %s6, 256, %s72, [#allocation9], 64, 64, 4
    $region29: #{tpu_custom_call.1} parent=1 // pred_fallthru
      _
    // Predicated region
    $region30: #{tpu_custom_call.1} parent=1 // pred_check
      _
    $region31: #{tpu_custom_call.1} parent=1 // pred_check_branch
      %79 = sbr.rel (0) target = $region33
    $region32: #{tpu_custom_call.1} parent=1 // pred_region
      %s81 = ssub.s32 16, 16
      %82 = vsyncadd [#allocation9], %s81
      %s84 = sshll.u32 [#allocation10], 4
      %s85 = int_to_ptr.vmem [resolvable:$true] %s84
      %87 = dma.hbm_to_vmem [thread:$0]  %s7, 16, %s85, [#allocation9]
    $region33: #{tpu_custom_call.1} parent=1 // pred_fallthru
      _
    // Predicated region
    $region34: #{tpu_custom_call.1} parent=1 // pred_check
      _
    $region35: #{tpu_custom_call.1} parent=1 // pred_check_branch
      %89 = sbr.rel (0) target = $region37
    $region36: #{tpu_custom_call.1} parent=1 // pred_region
      %s91 = ssub.s32 256, 256
      %92 = vsyncadd [#allocation12], %s91
      %s93 = sshll.u32 [#allocation11], 4
      %s94 = int_to_ptr.vmem [resolvable:$true] %s93
      %99 = dma.hbm_to_vmem [thread:$0]  %s8, 256, %s94, [#allocation12], 64, 64, 4
    $region37: #{tpu_custom_call.1} parent=1 // pred_fallthru
      _
    // Predicated region
    $region38: #{tpu_custom_call.1} parent=1 // pred_check
      _
    $region39: #{tpu_custom_call.1} parent=1 // pred_check_branch
      %101 = sbr.rel (0) target = $region41
    $region40: #{tpu_custom_call.1} parent=1 // pred_region
      %s103 = ssub.s32 16, 16
      %104 = vsyncadd [#allocation12], %s103
      %s106 = sshll.u32 [#allocation13], 4
      %s107 = int_to_ptr.vmem [resolvable:$true] %s106
      %109 = dma.hbm_to_vmem [thread:$0]  %s9, 16, %s107, [#allocation12]
    $region41: #{tpu_custom_call.1} parent=1 // pred_fallthru
      _
    // Predicated region
    $region42: #{tpu_custom_call.1} parent=1 // pred_check
      _
    $region43: #{tpu_custom_call.1} parent=1 // pred_check_branch
      %111 = sbr.rel (0) target = $region45
    $region44: #{tpu_custom_call.1} parent=1 // pred_region
      _
    $region45: #{tpu_custom_call.1} parent=1 // pred_fallthru
      _
    // Predicated region
    $region46: #{tpu_custom_call.1} parent=1 // pred_check
      _
    $region47: #{tpu_custom_call.1} parent=1 // pred_check_branch
      %113 = sbr.rel (0) target = $region49
    $region48: #{tpu_custom_call.1} parent=1 // pred_region
      _
    $region49: #{tpu_custom_call.1} parent=1 // pred_fallthru
      _
    // Predicated region
    $region50: #{tpu_custom_call.1} parent=1 // pred_check
      _
    $region51: #{tpu_custom_call.1} parent=1 // pred_check_branch
      %115 = sbr.rel (0) target = $region53
    $region52: #{tpu_custom_call.1} parent=1 // pred_region
      _
    $region53: #{tpu_custom_call.1} parent=1 // pred_fallthru
      _
    // Predicated region
    $region54: #{tpu_custom_call.1} parent=1 // pred_check
      _
    $region55: #{tpu_custom_call.1} parent=1 // pred_check_branch
      %117 = sbr.rel (0) target = $region57
    $region56: #{tpu_custom_call.1} parent=1 // pred_region
      _
    $region57: #{tpu_custom_call.1} parent=1 // pred_fallthru
      _
    // Predicated region
    $region58: #{tpu_custom_call.1} parent=1 // pred_check
      _
    $region59: #{tpu_custom_call.1} parent=1 // pred_check_branch
      %119 = sbr.rel (0) target = $region61
    $region60: #{tpu_custom_call.1} parent=1 // pred_region
      _
    $region61: #{tpu_custom_call.1} parent=1 // pred_fallthru
      _
    // Predicated region
    $region62: #{tpu_custom_call.1} parent=1 // pred_check
      _
    $region63: #{tpu_custom_call.1} parent=1 // pred_check_branch
      %121 = sbr.rel (0) target = $region65
    $region64: #{tpu_custom_call.1} parent=1 // pred_region
      _
    $region65: #{tpu_custom_call.1} parent=1 // pred_fallthru
      _
    // Predicated region
    $region66: #{tpu_custom_call.1} parent=1 // pred_check
      _
    $region67: #{tpu_custom_call.1} parent=1 // pred_check_branch
      %123 = sbr.rel (0) target = $region69
    $region68: #{tpu_custom_call.1} parent=1 // pred_region
      _
    $region69: #{tpu_custom_call.1} parent=1 // pred_fallthru
      _
    // Predicated region
    $region70: #{tpu_custom_call.1} parent=1 // pred_check
      _
    $region71: #{tpu_custom_call.1} parent=1 // pred_check_branch
      %125 = sbr.rel (0) target = $region73
    $region72: #{tpu_custom_call.1} parent=1 // pred_region
      _
    $region73: #{tpu_custom_call.1} parent=1 // pred_fallthru
      _
    // Predicated region
    $region74: #{tpu_custom_call.1} parent=1 // pred_check
      _
    $region75: #{tpu_custom_call.1} parent=1 // pred_check_branch
      %127 = sbr.rel (0) target = $region77
    $region76: #{tpu_custom_call.1} parent=1 // pred_region
      %128 = dma.done [#allocation3], 16
    $region77: #{tpu_custom_call.1} parent=1 // pred_fallthru
      _
    // Predicated region
    $region78: #{tpu_custom_call.1} parent=1 // pred_check
      _
    $region79: #{tpu_custom_call.1} parent=1 // pred_check_branch
      %130 = sbr.rel (0) target = $region81
    $region80: #{tpu_custom_call.1} parent=1 // pred_region
      %131 = dma.done [#allocation6], 256
    $region81: #{tpu_custom_call.1} parent=1 // pred_fallthru
      _
    // Predicated region
    $region82: #{tpu_custom_call.1} parent=1 // pred_check
      _
    $region83: #{tpu_custom_call.1} parent=1 // pred_check_branch
      %133 = sbr.rel (0) target = $region85
    $region84: #{tpu_custom_call.1} parent=1 // pred_region
      %134 = dma.done [#allocation6], 16
    $region85: #{tpu_custom_call.1} parent=1 // pred_fallthru
      _
    // Predicated region
    $region86: #{tpu_custom_call.1} parent=1 // pred_check
      _
    $region87: #{tpu_custom_call.1} parent=1 // pred_check_branch
      %136 = sbr.rel (0) target = $region89
    $region88: #{tpu_custom_call.1} parent=1 // pred_region
      %137 = dma.done [#allocation9], 256
    $region89: #{tpu_custom_call.1} parent=1 // pred_fallthru
      _
    // Predicated region
    $region90: #{tpu_custom_call.1} parent=1 // pred_check
      _
    $region91: #{tpu_custom_call.1} parent=1 // pred_check_branch
      %139 = sbr.rel (0) target = $region93
    $region92: #{tpu_custom_call.1} parent=1 // pred_region
      %140 = dma.done [#allocation9], 16
    $region93: #{tpu_custom_call.1} parent=1 // pred_fallthru
      _
    // Predicated region
    $region94: #{tpu_custom_call.1} parent=1 // pred_check
      _
    $region95: #{tpu_custom_call.1} parent=1 // pred_check_branch
      %142 = sbr.rel (0) target = $region97
    $region96: #{tpu_custom_call.1} parent=1 // pred_region
      %143 = dma.done [#allocation12], 256
    $region97: #{tpu_custom_call.1} parent=1 // pred_fallthru
      _
    // Predicated region
    $region98: #{tpu_custom_call.1} parent=1 // pred_check
      _
    $region99: #{tpu_custom_call.1} parent=1 // pred_check_branch
      %145 = sbr.rel (0) target = $region101
    $region100: #{tpu_custom_call.1} parent=1 // pred_region
      %146 = dma.done [#allocation12], 16
    $region101: #{tpu_custom_call.1} parent=1 // pred_fallthru
      _
    %v148 = vld [vmem:[%s0] sm:$0xff]
    %v149 = vld [vmem:[%s0 + $0x8] sm:$0xff]
    %v150 = vpack.c.bf16 %v149, %v148
    %v151 = vld [vmem:[%s2] sm:$0xf]
    %v152 = vld [vmem:[%s2 + $0x4] sm:$0xf]
    %v153 = vld [vmem:[%s2 + $0x8] sm:$0xf]
    %v154 = vld [vmem:[%s2 + $0xc] sm:$0xf]
    %v155 = vld [vmem:[#allocation2] sm:$0x1]
    %v157 = vlaneseq
    %v158 = vshrl.u32 %v157, 7
    %v159 = vsub.s32 0, %v158
    %v160 = vrot.slane %v155, %v159
    %v166 = vunpack.c.l.b16 %v151
    %v167 = vunpack.c.l.b16 %v152
    %v168 = vunpack.c.l.b16 %v153
    %v169 = vunpack.c.l.b16 %v154
    %v170 = vpack.c.b16 %v167, %v166
    %v171 = vpack.c.b16 %v169, %v168
    %vm174 = vcmask 261120
    %v176 = vsel %vm174, %v150, 0
    %178 = vmatprep.subr.bf16.mxu0 0
    %179 = vmatpush1.bf16.msra.mxu0 0
    %180 = vmatprep.subr.bf16.mxu0 0
    %181 = vmatpush1.bf16.msra.mxu0 0
    %182 = vmatprep.subr.bf16.mxu0 0
    %183 = vmatpush1.bf16.msra.mxu0 0
    %184 = vmatprep.subr.bf16.mxu0 0
    %185 = vmatpush1.bf16.msra.mxu0 0
    %186 = vmatprep.subr.bf16.mxu0 0
    %187 = vmatpush1.bf16.msra.mxu0 0
    %188 = vmatprep.subr.bf16.mxu0 0
    %189 = vmatpush1.bf16.msra.mxu0 0
    %190 = vmatprep.subr.bf16.mxu0 0
    %191 = vmatpush1.bf16.msra.mxu0 %v171
    %192 = vmatprep.subr.bf16.mxu0 0
    %193 = vmatpush1.bf16.msra.mxu0 %v170
    %194 = vmatprep.subr.bf16.mxu0 0
    %195 = vmatpush2.bf16.msra.mxu0 0
    %196 = vmatprep.subr.bf16.mxu0 0
    %197 = vmatpush2.bf16.msra.mxu0 0
    %198 = vmatprep.subr.bf16.mxu0 0
    %199 = vmatpush2.bf16.msra.mxu0 0
    %200 = vmatprep.subr.bf16.mxu0 0
    %201 = vmatpush2.bf16.msra.mxu0 0
    %202 = vmatprep.subr.bf16.mxu0 0
    %203 = vmatpush2.bf16.msra.mxu0 0
    %204 = vmatprep.subr.bf16.mxu0 0
    %205 = vmatpush2.bf16.msra.mxu0 0
    %206 = vmatprep.subr.bf16.mxu0 0
    %207 = vmatpush2.bf16.msra.mxu0 0
    %208 = vmatprep.subr.bf16.mxu0 0
    %209 = vmatpush2.bf16.msra.mxu0 0
    %210 = vmatprep.mubr.bf16.mxu0 0
    %211 = vmatmul.mubr.bf16.gmra.mxu0 %v176
    %v212 = vpop.f32.mrf.mxu0
    %v213 = vadd.f32 %v160, %v212
    %v214 = vpop.f32.mrf.mxu0
    %v215 = vpop.f32.mrf.mxu0
    %v216 = vadd.f32 %v160, %v215
    %v217 = vpop.f32.mrf.mxu0
    %218 = vdwg.mxu0
    %v219 = vld [vmem:[#allocation5] sm:$0xf]
    %v220 = vld [vmem:[#allocation5 + $0x4] sm:$0xf]
    %v221 = vld [vmem:[#allocation5 + $0x8] sm:$0xf]
    %v222 = vld [vmem:[#allocation5 + $0xc] sm:$0xf]
    %v223 = vld [vmem:[#allocation7] sm:$0x1]
    %v225 = vlaneseq
    %v226 = vshrl.u32 %v225, 7
    %v227 = vsub.s32 0, %v226
    %v228 = vrot.slane %v223, %v227
    %v234 = vunpack.c.l.b16 %v219
    %v235 = vunpack.c.l.b16 %v220
    %v236 = vunpack.c.l.b16 %v221
    %v237 = vunpack.c.l.b16 %v222
    %v238 = vpack.c.b16 %v235, %v234
    %v239 = vpack.c.b16 %v237, %v236
    %242 = vmatprep.subr.bf16.mxu0 0
    %243 = vmatpush1.bf16.msra.mxu0 0
    %244 = vmatprep.subr.bf16.mxu0 0
    %245 = vmatpush1.bf16.msra.mxu0 0
    %246 = vmatprep.subr.bf16.mxu0 0
    %247 = vmatpush1.bf16.msra.mxu0 0
    %248 = vmatprep.subr.bf16.mxu0 0
    %249 = vmatpush1.bf16.msra.mxu0 0
    %250 = vmatprep.subr.bf16.mxu0 0
    %251 = vmatpush1.bf16.msra.mxu0 0
    %252 = vmatprep.subr.bf16.mxu0 0
    %253 = vmatpush1.bf16.msra.mxu0 0
    %254 = vmatprep.subr.bf16.mxu0 0
    %255 = vmatpush1.bf16.msra.mxu0 %v239
    %256 = vmatprep.subr.bf16.mxu0 0
    %257 = vmatpush1.bf16.msra.mxu0 %v238
    %258 = vmatprep.subr.bf16.mxu0 0
    %259 = vmatpush2.bf16.msra.mxu0 0
    %260 = vmatprep.subr.bf16.mxu0 0
    %261 = vmatpush2.bf16.msra.mxu0 0
    %262 = vmatprep.subr.bf16.mxu0 0
    %263 = vmatpush2.bf16.msra.mxu0 0
    %264 = vmatprep.subr.bf16.mxu0 0
    %265 = vmatpush2.bf16.msra.mxu0 0
    %266 = vmatprep.subr.bf16.mxu0 0
    %267 = vmatpush2.bf16.msra.mxu0 0
    %268 = vmatprep.subr.bf16.mxu0 0
    %269 = vmatpush2.bf16.msra.mxu0 0
    %270 = vmatprep.subr.bf16.mxu0 0
    %271 = vmatpush2.bf16.msra.mxu0 0
    %272 = vmatprep.subr.bf16.mxu0 0
    %273 = vmatpush2.bf16.msra.mxu0 0
    %274 = vmatprep.mubr.bf16.mxu0 0
    %275 = vmatmul.mubr.bf16.gmra.mxu0 %v176
    %v276 = vpop.f32.mrf.mxu0
    %v277 = vadd.f32 %v228, %v276
    %v278 = vpop.f32.mrf.mxu0
    %v279 = vpop.f32.mrf.mxu0
    %v280 = vadd.f32 %v228, %v279
    %v281 = vpop.f32.mrf.mxu0
    %282 = vdwg.mxu0
    %v283 = vld [vmem:[#allocation8] sm:$0xf]
    %v284 = vld [vmem:[#allocation8 + $0x4] sm:$0xf]
    %v285 = vld [vmem:[#allocation8 + $0x8] sm:$0xf]
    %v286 = vld [vmem:[#allocation8 + $0xc] sm:$0xf]
    %v287 = vld [vmem:[#allocation10] sm:$0x1]
    %v289 = vlaneseq
    %v290 = vshrl.u32 %v289, 7
    %v291 = vsub.s32 0, %v290
    %v292 = vrot.slane %v287, %v291
    %v298 = vunpack.c.l.b16 %v283
    %v299 = vunpack.c.l.b16 %v284
    %v300 = vunpack.c.l.b16 %v285
    %v301 = vunpack.c.l.b16 %v286
    %v302 = vpack.c.b16 %v299, %v298
    %v303 = vpack.c.b16 %v301, %v300
    %306 = vmatprep.subr.bf16.mxu0 0
    %307 = vmatpush1.bf16.msra.mxu0 0
    %308 = vmatprep.subr.bf16.mxu0 0
    %309 = vmatpush1.bf16.msra.mxu0 0
    %310 = vmatprep.subr.bf16.mxu0 0
    %311 = vmatpush1.bf16.msra.mxu0 0
    %312 = vmatprep.subr.bf16.mxu0 0
    %313 = vmatpush1.bf16.msra.mxu0 0
    %314 = vmatprep.subr.bf16.mxu0 0
    %315 = vmatpush1.bf16.msra.mxu0 0
    %316 = vmatprep.subr.bf16.mxu0 0
    %317 = vmatpush1.bf16.msra.mxu0 0
    %318 = vmatprep.subr.bf16.mxu0 0
    %319 = vmatpush1.bf16.msra.mxu0 %v303
    %320 = vmatprep.subr.bf16.mxu0 0
    %321 = vmatpush1.bf16.msra.mxu0 %v302
    %322 = vmatprep.subr.bf16.mxu0 0
    %323 = vmatpush2.bf16.msra.mxu0 0
    %324 = vmatprep.subr.bf16.mxu0 0
    %325 = vmatpush2.bf16.msra.mxu0 0
    %326 = vmatprep.subr.bf16.mxu0 0
    %327 = vmatpush2.bf16.msra.mxu0 0
    %328 = vmatprep.subr.bf16.mxu0 0
    %329 = vmatpush2.bf16.msra.mxu0 0
    %330 = vmatprep.subr.bf16.mxu0 0
    %331 = vmatpush2.bf16.msra.mxu0 0
    %332 = vmatprep.subr.bf16.mxu0 0
    %333 = vmatpush2.bf16.msra.mxu0 0
    %334 = vmatprep.subr.bf16.mxu0 0
    %335 = vmatpush2.bf16.msra.mxu0 0
    %336 = vmatprep.subr.bf16.mxu0 0
    %337 = vmatpush2.bf16.msra.mxu0 0
    %338 = vmatprep.mubr.bf16.mxu0 0
    %339 = vmatmul.mubr.bf16.gmra.mxu0 %v176
    %v340 = vpop.f32.mrf.mxu0
    %v341 = vadd.f32 %v292, %v340
    %v342 = vpop.f32.mrf.mxu0
    %v343 = vpop.f32.mrf.mxu0
    %v344 = vadd.f32 %v292, %v343
    %v345 = vpop.f32.mrf.mxu0
    %346 = vdwg.mxu0
    %v347 = vmul.f32 %v213, 0.35355338
    %v348 = vmul.f32 %v216, 0.35355338
    %v349 = vpack.c.bf16 %v348, %v347
    %v351 = vunpack.c.l.b16 %v349
    %v352 = vunpack.c.h.b16 %v349
    %v353 = vpack.c.b16 %v351, %v351
    %v354 = vpack.c.b16 %v352, %v352
    %v355 = vpack.c.bf16 %v280, %v277
    %v357 = vunpack.c.l.b16 %v355
    %v358 = vunpack.c.h.b16 %v355
    %v359 = vpack.c.b16 %v357, %v357
    %v360 = vpack.c.b16 %v358, %v358
    %v361 = vpack.c.bf16 %v344, %v341
    %v363 = vunpack.c.l.b16 %v361
    %v364 = vunpack.c.h.b16 %v361
    %v365 = vpack.c.b16 %v363, %v363
    %v366 = vpack.c.b16 %v364, %v364
    %v367 = vld [vmem:[%s1] sm:$0xff]
    %v368 = vld [vmem:[%s1 + $0x8] sm:$0xff]
    %vm369 = vcmp.gt.s32.totalorder %v367, 0
    %vm370 = vcmp.gt.s32.totalorder %v368, 0
    %v371 = vsel %vm369, -1e+09, 0.0
    %v372 = vsel %vm370, -1e+09, 0.0
    %vm373 = vcmask 64512
    %v375 = vsel %vm373, %v353, 0
    %v378 = vsel %vm373, %v359, 0
    %380 = vmatprep.subr.bf16.mxu0 0
    %381 = vmatpush1.bf16.xpose.msra.mxu0 0
    %382 = vmatprep.subr.bf16.mxu0 0
    %383 = vmatpush1.bf16.xpose.msra.mxu0 0
    %384 = vmatprep.subr.bf16.mxu0 0
    %385 = vmatpush1.bf16.xpose.msra.mxu0 0
    %386 = vmatprep.subr.bf16.mxu0 0
    %387 = vmatpush1.bf16.xpose.msra.mxu0 0
    %388 = vmatprep.subr.bf16.mxu0 0
    %389 = vmatpush1.bf16.xpose.msra.mxu0 0
    %390 = vmatprep.subr.bf16.mxu0 0
    %391 = vmatpush1.bf16.xpose.msra.mxu0 0
    %392 = vmatprep.subr.bf16.mxu0 0
    %393 = vmatpush1.bf16.xpose.msra.mxu0 0
    %394 = vmatprep.subr.bf16.mxu0 0
    %395 = vmatpush1.bf16.xpose.msra.mxu0 %v378
    %396 = vmatprep.subr.bf16.mxu0 0
    %397 = vmatpush2.bf16.xpose.msra.mxu0 0
    %398 = vmatprep.subr.bf16.mxu0 0
    %399 = vmatpush2.bf16.xpose.msra.mxu0 0
    %400 = vmatprep.subr.bf16.mxu0 0
    %401 = vmatpush2.bf16.xpose.msra.mxu0 0
    %402 = vmatprep.subr.bf16.mxu0 0
    %403 = vmatpush2.bf16.xpose.msra.mxu0 0
    %404 = vmatprep.subr.bf16.mxu0 0
    %405 = vmatpush2.bf16.xpose.msra.mxu0 0
    %406 = vmatprep.subr.bf16.mxu0 0
    %407 = vmatpush2.bf16.xpose.msra.mxu0 0
    %408 = vmatprep.subr.bf16.mxu0 0
    %409 = vmatpush2.bf16.xpose.msra.mxu0 0
    %410 = vmatprep.subr.bf16.mxu0 0
    %411 = vmatpush2.bf16.xpose.msra.mxu0 0
    %412 = vmatprep.mubr.bf16.mxu0 0
    %413 = vmatmul.mubr.bf16.gmra.mxu0 %v375
    %v414 = vpop.f32.mrf.mxu0
    %v415 = vadd.f32 %v371, %v414
    %v416 = vpop.f32.mrf.mxu0
    %v417 = vpop.f32.mrf.mxu0
    %v418 = vpop.f32.mrf.mxu0
    %419 = vdwg.mxu0
    %v421 = vsel %vm373, %v354, 0
    %v424 = vsel %vm373, %v360, 0
    %426 = vmatprep.subr.bf16.mxu0 0
    %427 = vmatpush1.bf16.xpose.msra.mxu0 0
    %428 = vmatprep.subr.bf16.mxu0 0
    %429 = vmatpush1.bf16.xpose.msra.mxu0 0
    %430 = vmatprep.subr.bf16.mxu0 0
    %431 = vmatpush1.bf16.xpose.msra.mxu0 0
    %432 = vmatprep.subr.bf16.mxu0 0
    %433 = vmatpush1.bf16.xpose.msra.mxu0 0
    %434 = vmatprep.subr.bf16.mxu0 0
    %435 = vmatpush1.bf16.xpose.msra.mxu0 0
    %436 = vmatprep.subr.bf16.mxu0 0
    %437 = vmatpush1.bf16.xpose.msra.mxu0 0
    %438 = vmatprep.subr.bf16.mxu0 0
    %439 = vmatpush1.bf16.xpose.msra.mxu0 0
    %440 = vmatprep.subr.bf16.mxu0 0
    %441 = vmatpush1.bf16.xpose.msra.mxu0 %v424
    %442 = vmatprep.subr.bf16.mxu0 0
    %443 = vmatpush2.bf16.xpose.msra.mxu0 0
    %444 = vmatprep.subr.bf16.mxu0 0
    %445 = vmatpush2.bf16.xpose.msra.mxu0 0
    %446 = vmatprep.subr.bf16.mxu0 0
    %447 = vmatpush2.bf16.xpose.msra.mxu0 0
    %448 = vmatprep.subr.bf16.mxu0 0
    %449 = vmatpush2.bf16.xpose.msra.mxu0 0
    %450 = vmatprep.subr.bf16.mxu0 0
    %451 = vmatpush2.bf16.xpose.msra.mxu0 0
    %452 = vmatprep.subr.bf16.mxu0 0
    %453 = vmatpush2.bf16.xpose.msra.mxu0 0
    %454 = vmatprep.subr.bf16.mxu0 0
    %455 = vmatpush2.bf16.xpose.msra.mxu0 0
    %456 = vmatprep.subr.bf16.mxu0 0
    %457 = vmatpush2.bf16.xpose.msra.mxu0 0
    %458 = vmatprep.mubr.bf16.mxu0 0
    %459 = vmatmul.mubr.bf16.gmra.mxu0 %v421
    %v460 = vpop.f32.mrf.mxu0
    %v461 = vadd.f32 %v372, %v460
    %v462 = vpop.f32.mrf.mxu0
    %v463 = vpop.f32.mrf.mxu0
    %v464 = vpop.f32.mrf.mxu0
    %465 = vdwg.mxu0
    %v466 = vsel %vm373, %v415, -inf
    %467 = vmax.xlane.f32.xlu0 %v466
    %v468 = vpop.xlane.xlu0 %467
    %v469 = vsel %vm373, %v461, -inf
    %470 = vmax.xlane.f32.xlu0 %v469
    %v471 = vpop.xlane.xlu0 %470
    %v472 = vsub.f32 %v415, %v468
    %v473 = vsub.f32 %v461, %v471
    %v474 = vmul.f32 %v472, 1.442695
    %v475 = vpow.pop %v474
    %v476 = vmul.f32 %v473, 1.442695
    %v477 = vpow.pop %v476
    %v478 = vsel %vm373, %v475, 0.0
    %479 = vadd.xlane.f32.xlu0 %v478
    %v480 = vpop.xlane.xlu0 %479
    %v481 = vsel %vm373, %v477, 0.0
    %482 = vadd.xlane.f32.xlu0 %v481
    %v483 = vpop.xlane.xlu0 %482
    %v484 = vrcp.pop %v480
    %v485 = vrcp.pop %v483
    %v486 = vmul.f32 %v475, %v484
    %v487 = vmul.f32 %v477, %v485
    %v488 = vpack.c.bf16 %v486, %v486
    %v489 = vpack.c.bf16 %v487, %v487
    %v491 = vsel %vm373, %v488, 0
    %vm493 = vcmask 1043456
    %v495 = vsel %vm493, %v365, 0
    %497 = vmatprep.subr.bf16.mxu0 0
    %498 = vmatpush1.bf16.msra.mxu0 0
    %499 = vmatprep.subr.bf16.mxu0 0
    %500 = vmatpush1.bf16.msra.mxu0 0
    %501 = vmatprep.subr.bf16.mxu0 0
    %502 = vmatpush1.bf16.msra.mxu0 0
    %503 = vmatprep.subr.bf16.mxu0 0
    %504 = vmatpush1.bf16.msra.mxu0 0
    %505 = vmatprep.subr.bf16.mxu0 0
    %506 = vmatpush1.bf16.msra.mxu0 0
    %507 = vmatprep.subr.bf16.mxu0 0
    %508 = vmatpush1.bf16.msra.mxu0 0
    %509 = vmatprep.subr.bf16.mxu0 0
    %510 = vmatpush1.bf16.msra.mxu0 0
    %511 = vmatprep.subr.bf16.mxu0 0
    %512 = vmatpush1.bf16.msra.mxu0 %v495
    %513 = vmatprep.subr.bf16.mxu0 0
    %514 = vmatpush2.bf16.msra.mxu0 0
    %515 = vmatprep.subr.bf16.mxu0 0
    %516 = vmatpush2.bf16.msra.mxu0 0
    %517 = vmatprep.subr.bf16.mxu0 0
    %518 = vmatpush2.bf16.msra.mxu0 0
    %519 = vmatprep.subr.bf16.mxu0 0
    %520 = vmatpush2.bf16.msra.mxu0 0
    %521 = vmatprep.subr.bf16.mxu0 0
    %522 = vmatpush2.bf16.msra.mxu0 0
    %523 = vmatprep.subr.bf16.mxu0 0
    %524 = vmatpush2.bf16.msra.mxu0 0
    %525 = vmatprep.subr.bf16.mxu0 0
    %526 = vmatpush2.bf16.msra.mxu0 0
    %527 = vmatprep.subr.bf16.mxu0 0
    %528 = vmatpush2.bf16.msra.mxu0 0
    %529 = vmatprep.mubr.bf16.mxu0 0
    %530 = vmatmul.mubr.bf16.gmra.mxu0 %v491
    %v531 = vpop.f32.mrf.mxu0
    %v532 = vadd.f32 0.0, %v531
    %v533 = vpop.f32.mrf.mxu0
    %v534 = vpop.f32.mrf.mxu0
    %v535 = vpop.f32.mrf.mxu0
    %536 = vdwg.mxu0
    %v538 = vsel %vm373, %v489, 0
    %v541 = vsel %vm493, %v366, 0
    %543 = vmatprep.subr.bf16.mxu0 0
    %544 = vmatpush1.bf16.msra.mxu0 0
    %545 = vmatprep.subr.bf16.mxu0 0
    %546 = vmatpush1.bf16.msra.mxu0 0
    %547 = vmatprep.subr.bf16.mxu0 0
    %548 = vmatpush1.bf16.msra.mxu0 0
    %549 = vmatprep.subr.bf16.mxu0 0
    %550 = vmatpush1.bf16.msra.mxu0 0
    %551 = vmatprep.subr.bf16.mxu0 0
    %552 = vmatpush1.bf16.msra.mxu0 0
    %553 = vmatprep.subr.bf16.mxu0 0
    %554 = vmatpush1.bf16.msra.mxu0 0
    %555 = vmatprep.subr.bf16.mxu0 0
    %556 = vmatpush1.bf16.msra.mxu0 0
    %557 = vmatprep.subr.bf16.mxu0 0
    %558 = vmatpush1.bf16.msra.mxu0 %v541
    %559 = vmatprep.subr.bf16.mxu0 0
    %560 = vmatpush2.bf16.msra.mxu0 0
    %561 = vmatprep.subr.bf16.mxu0 0
    %562 = vmatpush2.bf16.msra.mxu0 0
    %563 = vmatprep.subr.bf16.mxu0 0
    %564 = vmatpush2.bf16.msra.mxu0 0
    %565 = vmatprep.subr.bf16.mxu0 0
    %566 = vmatpush2.bf16.msra.mxu0 0
    %567 = vmatprep.subr.bf16.mxu0 0
    %568 = vmatpush2.bf16.msra.mxu0 0
    %569 = vmatprep.subr.bf16.mxu0 0
    %570 = vmatpush2.bf16.msra.mxu0 0
    %571 = vmatprep.subr.bf16.mxu0 0
    %572 = vmatpush2.bf16.msra.mxu0 0
    %573 = vmatprep.subr.bf16.mxu0 0
    %574 = vmatpush2.bf16.msra.mxu0 0
    %575 = vmatprep.mubr.bf16.mxu0 0
    %576 = vmatmul.mubr.bf16.gmra.mxu0 %v538
    %v577 = vpop.f32.mrf.mxu0
    %v578 = vadd.f32 0.0, %v577
    %v579 = vpop.f32.mrf.mxu0
    %v580 = vpop.f32.mrf.mxu0
    %v581 = vpop.f32.mrf.mxu0
    %582 = vdwg.mxu0
    %583 = vrot.lane.b32.xlu0 %v353, 120
    %v584 = vpop.permute.xlu0 %583
    %585 = vrot.lane.b32.xlu0 %v359, 120
    %v586 = vpop.permute.xlu0 %585
    %v588 = vsel %vm373, %v584, 0
    %v591 = vsel %vm373, %v586, 0
    %593 = vmatprep.subr.bf16.mxu0 0
    %594 = vmatpush1.bf16.xpose.msra.mxu0 0
    %595 = vmatprep.subr.bf16.mxu0 0
    %596 = vmatpush1.bf16.xpose.msra.mxu0 0
    %597 = vmatprep.subr.bf16.mxu0 0
    %598 = vmatpush1.bf16.xpose.msra.mxu0 0
    %599 = vmatprep.subr.bf16.mxu0 0
    %600 = vmatpush1.bf16.xpose.msra.mxu0 0
    %601 = vmatprep.subr.bf16.mxu0 0
    %602 = vmatpush1.bf16.xpose.msra.mxu0 0
    %603 = vmatprep.subr.bf16.mxu0 0
    %604 = vmatpush1.bf16.xpose.msra.mxu0 0
    %605 = vmatprep.subr.bf16.mxu0 0
    %606 = vmatpush1.bf16.xpose.msra.mxu0 0
    %607 = vmatprep.subr.bf16.mxu0 0
    %608 = vmatpush1.bf16.xpose.msra.mxu0 %v591
    %609 = vmatprep.subr.bf16.mxu0 0
    %610 = vmatpush2.bf16.xpose.msra.mxu0 0
    %611 = vmatprep.subr.bf16.mxu0 0
    %612 = vmatpush2.bf16.xpose.msra.mxu0 0
    %613 = vmatprep.subr.bf16.mxu0 0
    %614 = vmatpush2.bf16.xpose.msra.mxu0 0
    %615 = vmatprep.subr.bf16.mxu0 0
    %616 = vmatpush2.bf16.xpose.msra.mxu0 0
    %617 = vmatprep.subr.bf16.mxu0 0
    %618 = vmatpush2.bf16.xpose.msra.mxu0 0
    %619 = vmatprep.subr.bf16.mxu0 0
    %620 = vmatpush2.bf16.xpose.msra.mxu0 0
    %621 = vmatprep.subr.bf16.mxu0 0
    %622 = vmatpush2.bf16.xpose.msra.mxu0 0
    %623 = vmatprep.subr.bf16.mxu0 0
    %624 = vmatpush2.bf16.xpose.msra.mxu0 0
    %625 = vmatprep.mubr.bf16.mxu0 0
    %626 = vmatmul.mubr.bf16.gmra.mxu0 %v588
    %v627 = vpop.f32.mrf.mxu0
    %v628 = vadd.f32 %v371, %v627
    %v629 = vpop.f32.mrf.mxu0
    %v630 = vpop.f32.mrf.mxu0
    %v631 = vpop.f32.mrf.mxu0
    %632 = vdwg.mxu0
    %633 = vrot.lane.b32.xlu0 %v354, 120
    %v634 = vpop.permute.xlu0 %633
    %635 = vrot.lane.b32.xlu0 %v360, 120
    %v636 = vpop.permute.xlu0 %635
    %v638 = vsel %vm373, %v634, 0
    %v641 = vsel %vm373, %v636, 0
    %643 = vmatprep.subr.bf16.mxu0 0
    %644 = vmatpush1.bf16.xpose.msra.mxu0 0
    %645 = vmatprep.subr.bf16.mxu0 0
    %646 = vmatpush1.bf16.xpose.msra.mxu0 0
    %647 = vmatprep.subr.bf16.mxu0 0
    %648 = vmatpush1.bf16.xpose.msra.mxu0 0
    %649 = vmatprep.subr.bf16.mxu0 0
    %650 = vmatpush1.bf16.xpose.msra.mxu0 0
    %651 = vmatprep.subr.bf16.mxu0 0
    %652 = vmatpush1.bf16.xpose.msra.mxu0 0
    %653 = vmatprep.subr.bf16.mxu0 0
    %654 = vmatpush1.bf16.xpose.msra.mxu0 0
    %655 = vmatprep.subr.bf16.mxu0 0
    %656 = vmatpush1.bf16.xpose.msra.mxu0 0
    %657 = vmatprep.subr.bf16.mxu0 0
    %658 = vmatpush1.bf16.xpose.msra.mxu0 %v641
    %659 = vmatprep.subr.bf16.mxu0 0
    %660 = vmatpush2.bf16.xpose.msra.mxu0 0
    %661 = vmatprep.subr.bf16.mxu0 0
    %662 = vmatpush2.bf16.xpose.msra.mxu0 0
    %663 = vmatprep.subr.bf16.mxu0 0
    %664 = vmatpush2.bf16.xpose.msra.mxu0 0
    %665 = vmatprep.subr.bf16.mxu0 0
    %666 = vmatpush2.bf16.xpose.msra.mxu0 0
    %667 = vmatprep.subr.bf16.mxu0 0
    %668 = vmatpush2.bf16.xpose.msra.mxu0 0
    %669 = vmatprep.subr.bf16.mxu0 0
    %670 = vmatpush2.bf16.xpose.msra.mxu0 0
    %671 = vmatprep.subr.bf16.mxu0 0
    %672 = vmatpush2.bf16.xpose.msra.mxu0 0
    %673 = vmatprep.subr.bf16.mxu0 0
    %674 = vmatpush2.bf16.xpose.msra.mxu0 0
    %675 = vmatprep.mubr.bf16.mxu0 0
    %676 = vmatmul.mubr.bf16.gmra.mxu0 %v638
    %v677 = vpop.f32.mrf.mxu0
    %v678 = vadd.f32 %v372, %v677
    %v679 = vpop.f32.mrf.mxu0
    %v680 = vpop.f32.mrf.mxu0
    %v681 = vpop.f32.mrf.mxu0
    %682 = vdwg.mxu0
    %v683 = vsel %vm373, %v628, -inf
    %684 = vmax.xlane.f32.xlu0 %v683
    %v685 = vpop.xlane.xlu0 %684
    %v686 = vsel %vm373, %v678, -inf
    %687 = vmax.xlane.f32.xlu0 %v686
    %v688 = vpop.xlane.xlu0 %687
    %v689 = vsub.f32 %v628, %v685
    %v690 = vsub.f32 %v678, %v688
    %v691 = vmul.f32 %v689, 1.442695
    %v692 = vpow.pop %v691
    %v693 = vmul.f32 %v690, 1.442695
    %v694 = vpow.pop %v693
    %v695 = vsel %vm373, %v692, 0.0
    %696 = vadd.xlane.f32.xlu0 %v695
    %v697 = vpop.xlane.xlu0 %696
    %v698 = vsel %vm373, %v694, 0.0
    %699 = vadd.xlane.f32.xlu0 %v698
    %v700 = vpop.xlane.xlu0 %699
    %v701 = vrcp.pop %v697
    %v702 = vrcp.pop %v700
    %v703 = vmul.f32 %v692, %v701
    %v704 = vmul.f32 %v694, %v702
    %v705 = vpack.c.bf16 %v703, %v703
    %v706 = vpack.c.bf16 %v704, %v704
    %707 = vrot.lane.b32.xlu0 %v365, 120
    %v708 = vpop.permute.xlu0 %707
    %v710 = vsel %vm373, %v705, 0
    %v713 = vsel %vm493, %v708, 0
    %715 = vmatprep.subr.bf16.mxu0 0
    %716 = vmatpush1.bf16.msra.mxu0 0
    %717 = vmatprep.subr.bf16.mxu0 0
    %718 = vmatpush1.bf16.msra.mxu0 0
    %719 = vmatprep.subr.bf16.mxu0 0
    %720 = vmatpush1.bf16.msra.mxu0 0
    %721 = vmatprep.subr.bf16.mxu0 0
    %722 = vmatpush1.bf16.msra.mxu0 0
    %723 = vmatprep.subr.bf16.mxu0 0
    %724 = vmatpush1.bf16.msra.mxu0 0
    %725 = vmatprep.subr.bf16.mxu0 0
    %726 = vmatpush1.bf16.msra.mxu0 0
    %727 = vmatprep.subr.bf16.mxu0 0
    %728 = vmatpush1.bf16.msra.mxu0 0
    %729 = vmatprep.subr.bf16.mxu0 0
    %730 = vmatpush1.bf16.msra.mxu0 %v713
    %731 = vmatprep.subr.bf16.mxu0 0
    %732 = vmatpush2.bf16.msra.mxu0 0
    %733 = vmatprep.subr.bf16.mxu0 0
    %734 = vmatpush2.bf16.msra.mxu0 0
    %735 = vmatprep.subr.bf16.mxu0 0
    %736 = vmatpush2.bf16.msra.mxu0 0
    %737 = vmatprep.subr.bf16.mxu0 0
    %738 = vmatpush2.bf16.msra.mxu0 0
    %739 = vmatprep.subr.bf16.mxu0 0
    %740 = vmatpush2.bf16.msra.mxu0 0
    %741 = vmatprep.subr.bf16.mxu0 0
    %742 = vmatpush2.bf16.msra.mxu0 0
    %743 = vmatprep.subr.bf16.mxu0 0
    %744 = vmatpush2.bf16.msra.mxu0 0
    %745 = vmatprep.subr.bf16.mxu0 0
    %746 = vmatpush2.bf16.msra.mxu0 0
    %747 = vmatprep.mubr.bf16.mxu0 0
    %748 = vmatmul.mubr.bf16.gmra.mxu0 %v710
    %v749 = vpop.f32.mrf.mxu0
    %v750 = vadd.f32 0.0, %v749
    %v751 = vpop.f32.mrf.mxu0
    %v752 = vpop.f32.mrf.mxu0
    %v753 = vpop.f32.mrf.mxu0
    %754 = vdwg.mxu0
    %755 = vrot.lane.b32.xlu0 %v366, 120
    %v756 = vpop.permute.xlu0 %755
    %v758 = vsel %vm373, %v706, 0
    %v761 = vsel %vm493, %v756, 0
    %763 = vmatprep.subr.bf16.mxu0 0
    %764 = vmatpush1.bf16.msra.mxu0 0
    %765 = vmatprep.subr.bf16.mxu0 0
    %766 = vmatpush1.bf16.msra.mxu0 0
    %767 = vmatprep.subr.bf16.mxu0 0
    %768 = vmatpush1.bf16.msra.mxu0 0
    %769 = vmatprep.subr.bf16.mxu0 0
    %770 = vmatpush1.bf16.msra.mxu0 0
    %771 = vmatprep.subr.bf16.mxu0 0
    %772 = vmatpush1.bf16.msra.mxu0 0
    %773 = vmatprep.subr.bf16.mxu0 0
    %774 = vmatpush1.bf16.msra.mxu0 0
    %775 = vmatprep.subr.bf16.mxu0 0
    %776 = vmatpush1.bf16.msra.mxu0 0
    %777 = vmatprep.subr.bf16.mxu0 0
    %778 = vmatpush1.bf16.msra.mxu0 %v761
    %779 = vmatprep.subr.bf16.mxu0 0
    %780 = vmatpush2.bf16.msra.mxu0 0
    %781 = vmatprep.subr.bf16.mxu0 0
    %782 = vmatpush2.bf16.msra.mxu0 0
    %783 = vmatprep.subr.bf16.mxu0 0
    %784 = vmatpush2.bf16.msra.mxu0 0
    %785 = vmatprep.subr.bf16.mxu0 0
    %786 = vmatpush2.bf16.msra.mxu0 0
    %787 = vmatprep.subr.bf16.mxu0 0
    %788 = vmatpush2.bf16.msra.mxu0 0
    %789 = vmatprep.subr.bf16.mxu0 0
    %790 = vmatpush2.bf16.msra.mxu0 0
    %791 = vmatprep.subr.bf16.mxu0 0
    %792 = vmatpush2.bf16.msra.mxu0 0
    %793 = vmatprep.subr.bf16.mxu0 0
    %794 = vmatpush2.bf16.msra.mxu0 0
    %795 = vmatprep.mubr.bf16.mxu0 0
    %796 = vmatmul.mubr.bf16.gmra.mxu0 %v758
    %v797 = vpop.f32.mrf.mxu0
    %v798 = vadd.f32 0.0, %v797
    %v799 = vpop.f32.mrf.mxu0
    %v800 = vpop.f32.mrf.mxu0
    %v801 = vpop.f32.mrf.mxu0
    %802 = vdwg.mxu0
    %803 = vrot.lane.b32.xlu0 %v353, 112
    %v804 = vpop.permute.xlu0 %803
    %805 = vrot.lane.b32.xlu0 %v359, 112
    %v806 = vpop.permute.xlu0 %805
    %v808 = vsel %vm373, %v804, 0
    %v811 = vsel %vm373, %v806, 0
    %813 = vmatprep.subr.bf16.mxu0 0
    %814 = vmatpush1.bf16.xpose.msra.mxu0 0
    %815 = vmatprep.subr.bf16.mxu0 0
    %816 = vmatpush1.bf16.xpose.msra.mxu0 0
    %817 = vmatprep.subr.bf16.mxu0 0
    %818 = vmatpush1.bf16.xpose.msra.mxu0 0
    %819 = vmatprep.subr.bf16.mxu0 0
    %820 = vmatpush1.bf16.xpose.msra.mxu0 0
    %821 = vmatprep.subr.bf16.mxu0 0
    %822 = vmatpush1.bf16.xpose.msra.mxu0 0
    %823 = vmatprep.subr.bf16.mxu0 0
    %824 = vmatpush1.bf16.xpose.msra.mxu0 0
    %825 = vmatprep.subr.bf16.mxu0 0
    %826 = vmatpush1.bf16.xpose.msra.mxu0 0
    %827 = vmatprep.subr.bf16.mxu0 0
    %828 = vmatpush1.bf16.xpose.msra.mxu0 %v811
    %829 = vmatprep.subr.bf16.mxu0 0
    %830 = vmatpush2.bf16.xpose.msra.mxu0 0
    %831 = vmatprep.subr.bf16.mxu0 0
    %832 = vmatpush2.bf16.xpose.msra.mxu0 0
    %833 = vmatprep.subr.bf16.mxu0 0
    %834 = vmatpush2.bf16.xpose.msra.mxu0 0
    %835 = vmatprep.subr.bf16.mxu0 0
    %836 = vmatpush2.bf16.xpose.msra.mxu0 0
    %837 = vmatprep.subr.bf16.mxu0 0
    %838 = vmatpush2.bf16.xpose.msra.mxu0 0
    %839 = vmatprep.subr.bf16.mxu0 0
    %840 = vmatpush2.bf16.xpose.msra.mxu0 0
    %841 = vmatprep.subr.bf16.mxu0 0
    %842 = vmatpush2.bf16.xpose.msra.mxu0 0
    %843 = vmatprep.subr.bf16.mxu0 0
    %844 = vmatpush2.bf16.xpose.msra.mxu0 0
    %845 = vmatprep.mubr.bf16.mxu0 0
    %846 = vmatmul.mubr.bf16.gmra.mxu0 %v808
    %v847 = vpop.f32.mrf.mxu0
    %v848 = vadd.f32 %v371, %v847
    %v849 = vpop.f32.mrf.mxu0
    %v850 = vpop.f32.mrf.mxu0
    %v851 = vpop.f32.mrf.mxu0
    %852 = vdwg.mxu0
    %853 = vrot.lane.b32.xlu0 %v354, 112
    %v854 = vpop.permute.xlu0 %853
    %855 = vrot.lane.b32.xlu0 %v360, 112
    %v856 = vpop.permute.xlu0 %855
    %v858 = vsel %vm373, %v854, 0
    %v861 = vsel %vm373, %v856, 0
    %863 = vmatprep.subr.bf16.mxu0 0
    %864 = vmatpush1.bf16.xpose.msra.mxu0 0
    %865 = vmatprep.subr.bf16.mxu0 0
    %866 = vmatpush1.bf16.xpose.msra.mxu0 0
    %867 = vmatprep.subr.bf16.mxu0 0
    %868 = vmatpush1.bf16.xpose.msra.mxu0 0
    %869 = vmatprep.subr.bf16.mxu0 0
    %870 = vmatpush1.bf16.xpose.msra.mxu0 0
    %871 = vmatprep.subr.bf16.mxu0 0
    %872 = vmatpush1.bf16.xpose.msra.mxu0 0
    %873 = vmatprep.subr.bf16.mxu0 0
    %874 = vmatpush1.bf16.xpose.msra.mxu0 0
    %875 = vmatprep.subr.bf16.mxu0 0
    %876 = vmatpush1.bf16.xpose.msra.mxu0 0
    %877 = vmatprep.subr.bf16.mxu0 0
    %878 = vmatpush1.bf16.xpose.msra.mxu0 %v861
    %879 = vmatprep.subr.bf16.mxu0 0
    %880 = vmatpush2.bf16.xpose.msra.mxu0 0
    %881 = vmatprep.subr.bf16.mxu0 0
    %882 = vmatpush2.bf16.xpose.msra.mxu0 0
    %883 = vmatprep.subr.bf16.mxu0 0
    %884 = vmatpush2.bf16.xpose.msra.mxu0 0
    %885 = vmatprep.subr.bf16.mxu0 0
    %886 = vmatpush2.bf16.xpose.msra.mxu0 0
    %887 = vmatprep.subr.bf16.mxu0 0
    %888 = vmatpush2.bf16.xpose.msra.mxu0 0
    %889 = vmatprep.subr.bf16.mxu0 0
    %890 = vmatpush2.bf16.xpose.msra.mxu0 0
    %891 = vmatprep.subr.bf16.mxu0 0
    %892 = vmatpush2.bf16.xpose.msra.mxu0 0
    %893 = vmatprep.subr.bf16.mxu0 0
    %894 = vmatpush2.bf16.xpose.msra.mxu0 0
    %895 = vmatprep.mubr.bf16.mxu0 0
    %896 = vmatmul.mubr.bf16.gmra.mxu0 %v858
    %v897 = vpop.f32.mrf.mxu0
    %v898 = vadd.f32 %v372, %v897
    %v899 = vpop.f32.mrf.mxu0
    %v900 = vpop.f32.mrf.mxu0
    %v901 = vpop.f32.mrf.mxu0
    %902 = vdwg.mxu0
    %v903 = vsel %vm373, %v848, -inf
    %904 = vmax.xlane.f32.xlu0 %v903
    %v905 = vpop.xlane.xlu0 %904
    %v906 = vsel %vm373, %v898, -inf
    %907 = vmax.xlane.f32.xlu0 %v906
    %v908 = vpop.xlane.xlu0 %907
    %v909 = vsub.f32 %v848, %v905
    %v910 = vsub.f32 %v898, %v908
    %v911 = vmul.f32 %v909, 1.442695
    %v912 = vpow.pop %v911
    %v913 = vmul.f32 %v910, 1.442695
    %v914 = vpow.pop %v913
    %v915 = vsel %vm373, %v912, 0.0
    %916 = vadd.xlane.f32.xlu0 %v915
    %v917 = vpop.xlane.xlu0 %916
    %v918 = vsel %vm373, %v914, 0.0
    %919 = vadd.xlane.f32.xlu0 %v918
    %v920 = vpop.xlane.xlu0 %919
    %v921 = vrcp.pop %v917
    %v922 = vrcp.pop %v920
    %v923 = vmul.f32 %v912, %v921
    %v924 = vmul.f32 %v914, %v922
    %v925 = vpack.c.bf16 %v923, %v923
    %v926 = vpack.c.bf16 %v924, %v924
    %927 = vrot.lane.b32.xlu0 %v365, 112
    %v928 = vpop.permute.xlu0 %927
    %v930 = vsel %vm373, %v925, 0
    %v933 = vsel %vm493, %v928, 0
    %935 = vmatprep.subr.bf16.mxu0 0
    %936 = vmatpush1.bf16.msra.mxu0 0
    %937 = vmatprep.subr.bf16.mxu0 0
    %938 = vmatpush1.bf16.msra.mxu0 0
    %939 = vmatprep.subr.bf16.mxu0 0
    %940 = vmatpush1.bf16.msra.mxu0 0
    %941 = vmatprep.subr.bf16.mxu0 0
    %942 = vmatpush1.bf16.msra.mxu0 0
    %943 = vmatprep.subr.bf16.mxu0 0
    %944 = vmatpush1.bf16.msra.mxu0 0
    %945 = vmatprep.subr.bf16.mxu0 0
    %946 = vmatpush1.bf16.msra.mxu0 0
    %947 = vmatprep.subr.bf16.mxu0 0
    %948 = vmatpush1.bf16.msra.mxu0 0
    %949 = vmatprep.subr.bf16.mxu0 0
    %950 = vmatpush1.bf16.msra.mxu0 %v933
    %951 = vmatprep.subr.bf16.mxu0 0
    %952 = vmatpush2.bf16.msra.mxu0 0
    %953 = vmatprep.subr.bf16.mxu0 0
    %954 = vmatpush2.bf16.msra.mxu0 0
    %955 = vmatprep.subr.bf16.mxu0 0
    %956 = vmatpush2.bf16.msra.mxu0 0
    %957 = vmatprep.subr.bf16.mxu0 0
    %958 = vmatpush2.bf16.msra.mxu0 0
    %959 = vmatprep.subr.bf16.mxu0 0
    %960 = vmatpush2.bf16.msra.mxu0 0
    %961 = vmatprep.subr.bf16.mxu0 0
    %962 = vmatpush2.bf16.msra.mxu0 0
    %963 = vmatprep.subr.bf16.mxu0 0
    %964 = vmatpush2.bf16.msra.mxu0 0
    %965 = vmatprep.subr.bf16.mxu0 0
    %966 = vmatpush2.bf16.msra.mxu0 0
    %967 = vmatprep.mubr.bf16.mxu0 0
    %968 = vmatmul.mubr.bf16.gmra.mxu0 %v930
    %v969 = vpop.f32.mrf.mxu0
    %v970 = vadd.f32 0.0, %v969
    %v971 = vpop.f32.mrf.mxu0
    %v972 = vpop.f32.mrf.mxu0
    %v973 = vpop.f32.mrf.mxu0
    %974 = vdwg.mxu0
    %975 = vrot.lane.b32.xlu0 %v366, 112
    %v976 = vpop.permute.xlu0 %975
    %v978 = vsel %vm373, %v926, 0
    %v981 = vsel %vm493, %v976, 0
    %983 = vmatprep.subr.bf16.mxu0 0
    %984 = vmatpush1.bf16.msra.mxu0 0
    %985 = vmatprep.subr.bf16.mxu0 0
    %986 = vmatpush1.bf16.msra.mxu0 0
    %987 = vmatprep.subr.bf16.mxu0 0
    %988 = vmatpush1.bf16.msra.mxu0 0
    %989 = vmatprep.subr.bf16.mxu0 0
    %990 = vmatpush1.bf16.msra.mxu0 0
    %991 = vmatprep.subr.bf16.mxu0 0
    %992 = vmatpush1.bf16.msra.mxu0 0
    %993 = vmatprep.subr.bf16.mxu0 0
    %994 = vmatpush1.bf16.msra.mxu0 0
    %995 = vmatprep.subr.bf16.mxu0 0
    %996 = vmatpush1.bf16.msra.mxu0 0
    %997 = vmatprep.subr.bf16.mxu0 0
    %998 = vmatpush1.bf16.msra.mxu0 %v981
    %999 = vmatprep.subr.bf16.mxu0 0
    %1000 = vmatpush2.bf16.msra.mxu0 0
    %1001 = vmatprep.subr.bf16.mxu0 0
    %1002 = vmatpush2.bf16.msra.mxu0 0
    %1003 = vmatprep.subr.bf16.mxu0 0
    %1004 = vmatpush2.bf16.msra.mxu0 0
    %1005 = vmatprep.subr.bf16.mxu0 0
    %1006 = vmatpush2.bf16.msra.mxu0 0
    %1007 = vmatprep.subr.bf16.mxu0 0
    %1008 = vmatpush2.bf16.msra.mxu0 0
    %1009 = vmatprep.subr.bf16.mxu0 0
    %1010 = vmatpush2.bf16.msra.mxu0 0
    %1011 = vmatprep.subr.bf16.mxu0 0
    %1012 = vmatpush2.bf16.msra.mxu0 0
    %1013 = vmatprep.subr.bf16.mxu0 0
    %1014 = vmatpush2.bf16.msra.mxu0 0
    %1015 = vmatprep.mubr.bf16.mxu0 0
    %1016 = vmatmul.mubr.bf16.gmra.mxu0 %v978
    %v1017 = vpop.f32.mrf.mxu0
    %v1018 = vadd.f32 0.0, %v1017
    %v1019 = vpop.f32.mrf.mxu0
    %v1020 = vpop.f32.mrf.mxu0
    %v1021 = vpop.f32.mrf.mxu0
    %1022 = vdwg.mxu0
    %1023 = vrot.lane.b32.xlu0 %v353, 104
    %v1024 = vpop.permute.xlu0 %1023
    %1025 = vrot.lane.b32.xlu0 %v359, 104
    %v1026 = vpop.permute.xlu0 %1025
    %v1028 = vsel %vm373, %v1024, 0
    %v1031 = vsel %vm373, %v1026, 0
    %1033 = vmatprep.subr.bf16.mxu0 0
    %1034 = vmatpush1.bf16.xpose.msra.mxu0 0
    %1035 = vmatprep.subr.bf16.mxu0 0
    %1036 = vmatpush1.bf16.xpose.msra.mxu0 0
    %1037 = vmatprep.subr.bf16.mxu0 0
    %1038 = vmatpush1.bf16.xpose.msra.mxu0 0
    %1039 = vmatprep.subr.bf16.mxu0 0
    %1040 = vmatpush1.bf16.xpose.msra.mxu0 0
    %1041 = vmatprep.subr.bf16.mxu0 0
    %1042 = vmatpush1.bf16.xpose.msra.mxu0 0
    %1043 = vmatprep.subr.bf16.mxu0 0
    %1044 = vmatpush1.bf16.xpose.msra.mxu0 0
    %1045 = vmatprep.subr.bf16.mxu0 0
    %1046 = vmatpush1.bf16.xpose.msra.mxu0 0
    %1047 = vmatprep.subr.bf16.mxu0 0
    %1048 = vmatpush1.bf16.xpose.msra.mxu0 %v1031
    %1049 = vmatprep.subr.bf16.mxu0 0
    %1050 = vmatpush2.bf16.xpose.msra.mxu0 0
    %1051 = vmatprep.subr.bf16.mxu0 0
    %1052 = vmatpush2.bf16.xpose.msra.mxu0 0
    %1053 = vmatprep.subr.bf16.mxu0 0
    %1054 = vmatpush2.bf16.xpose.msra.mxu0 0
    %1055 = vmatprep.subr.bf16.mxu0 0
    %1056 = vmatpush2.bf16.xpose.msra.mxu0 0
    %1057 = vmatprep.subr.bf16.mxu0 0
    %1058 = vmatpush2.bf16.xpose.msra.mxu0 0
    %1059 = vmatprep.subr.bf16.mxu0 0
    %1060 = vmatpush2.bf16.xpose.msra.mxu0 0
    %1061 = vmatprep.subr.bf16.mxu0 0
    %1062 = vmatpush2.bf16.xpose.msra.mxu0 0
    %1063 = vmatprep.subr.bf16.mxu0 0
    %1064 = vmatpush2.bf16.xpose.msra.mxu0 0
    %1065 = vmatprep.mubr.bf16.mxu0 0
    %1066 = vmatmul.mubr.bf16.gmra.mxu0 %v1028
    %v1067 = vpop.f32.mrf.mxu0
    %v1068 = vadd.f32 %v371, %v1067
    %v1069 = vpop.f32.mrf.mxu0
    %v1070 = vpop.f32.mrf.mxu0
    %v1071 = vpop.f32.mrf.mxu0
    %1072 = vdwg.mxu0
    %1073 = vrot.lane.b32.xlu0 %v354, 104
    %v1074 = vpop.permute.xlu0 %1073
    %1075 = vrot.lane.b32.xlu0 %v360, 104
    %v1076 = vpop.permute.xlu0 %1075
    %v1078 = vsel %vm373, %v1074, 0
    %v1081 = vsel %vm373, %v1076, 0
    %1083 = vmatprep.subr.bf16.mxu0 0
    %1084 = vmatpush1.bf16.xpose.msra.mxu0 0
    %1085 = vmatprep.subr.bf16.mxu0 0
    %1086 = vmatpush1.bf16.xpose.msra.mxu0 0
    %1087 = vmatprep.subr.bf16.mxu0 0
    %1088 = vmatpush1.bf16.xpose.msra.mxu0 0
    %1089 = vmatprep.subr.bf16.mxu0 0
    %1090 = vmatpush1.bf16.xpose.msra.mxu0 0
    %1091 = vmatprep.subr.bf16.mxu0 0
    %1092 = vmatpush1.bf16.xpose.msra.mxu0 0
    %1093 = vmatprep.subr.bf16.mxu0 0
    %1094 = vmatpush1.bf16.xpose.msra.mxu0 0
    %1095 = vmatprep.subr.bf16.mxu0 0
    %1096 = vmatpush1.bf16.xpose.msra.mxu0 0
    %1097 = vmatprep.subr.bf16.mxu0 0
    %1098 = vmatpush1.bf16.xpose.msra.mxu0 %v1081
    %1099 = vmatprep.subr.bf16.mxu0 0
    %1100 = vmatpush2.bf16.xpose.msra.mxu0 0
    %1101 = vmatprep.subr.bf16.mxu0 0
    %1102 = vmatpush2.bf16.xpose.msra.mxu0 0
    %1103 = vmatprep.subr.bf16.mxu0 0
    %1104 = vmatpush2.bf16.xpose.msra.mxu0 0
    %1105 = vmatprep.subr.bf16.mxu0 0
    %1106 = vmatpush2.bf16.xpose.msra.mxu0 0
    %1107 = vmatprep.subr.bf16.mxu0 0
    %1108 = vmatpush2.bf16.xpose.msra.mxu0 0
    %1109 = vmatprep.subr.bf16.mxu0 0
    %1110 = vmatpush2.bf16.xpose.msra.mxu0 0
    %1111 = vmatprep.subr.bf16.mxu0 0
    %1112 = vmatpush2.bf16.xpose.msra.mxu0 0
    %1113 = vmatprep.subr.bf16.mxu0 0
    %1114 = vmatpush2.bf16.xpose.msra.mxu0 0
    %1115 = vmatprep.mubr.bf16.mxu0 0
    %1116 = vmatmul.mubr.bf16.gmra.mxu0 %v1078
    %v1117 = vpop.f32.mrf.mxu0
    %v1118 = vadd.f32 %v372, %v1117
    %v1119 = vpop.f32.mrf.mxu0
    %v1120 = vpop.f32.mrf.mxu0
    %v1121 = vpop.f32.mrf.mxu0
    %1122 = vdwg.mxu0
    %v1123 = vsel %vm373, %v1068, -inf
    %1124 = vmax.xlane.f32.xlu0 %v1123
    %v1125 = vpop.xlane.xlu0 %1124
    %v1126 = vsel %vm373, %v1118, -inf
    %1127 = vmax.xlane.f32.xlu0 %v1126
    %v1128 = vpop.xlane.xlu0 %1127
    %v1129 = vsub.f32 %v1068, %v1125
    %v1130 = vsub.f32 %v1118, %v1128
    %v1131 = vmul.f32 %v1129, 1.442695
    %v1132 = vpow.pop %v1131
    %v1133 = vmul.f32 %v1130, 1.442695
    %v1134 = vpow.pop %v1133
    %v1135 = vsel %vm373, %v1132, 0.0
    %1136 = vadd.xlane.f32.xlu0 %v1135
    %v1137 = vpop.xlane.xlu0 %1136
    %v1138 = vsel %vm373, %v1134, 0.0
    %1139 = vadd.xlane.f32.xlu0 %v1138
    %v1140 = vpop.xlane.xlu0 %1139
    %v1141 = vrcp.pop %v1137
    %v1142 = vrcp.pop %v1140
    %v1143 = vmul.f32 %v1132, %v1141
    %v1144 = vmul.f32 %v1134, %v1142
    %v1145 = vpack.c.bf16 %v1143, %v1143
    %v1146 = vpack.c.bf16 %v1144, %v1144
    %1147 = vrot.lane.b32.xlu0 %v365, 104
    %v1148 = vpop.permute.xlu0 %1147
    %v1150 = vsel %vm373, %v1145, 0
    %v1153 = vsel %vm493, %v1148, 0
    %1155 = vmatprep.subr.bf16.mxu0 0
    %1156 = vmatpush1.bf16.msra.mxu0 0
    %1157 = vmatprep.subr.bf16.mxu0 0
    %1158 = vmatpush1.bf16.msra.mxu0 0
    %1159 = vmatprep.subr.bf16.mxu0 0
    %1160 = vmatpush1.bf16.msra.mxu0 0
    %1161 = vmatprep.subr.bf16.mxu0 0
    %1162 = vmatpush1.bf16.msra.mxu0 0
    %1163 = vmatprep.subr.bf16.mxu0 0
    %1164 = vmatpush1.bf16.msra.mxu0 0
    %1165 = vmatprep.subr.bf16.mxu0 0
    %1166 = vmatpush1.bf16.msra.mxu0 0
    %1167 = vmatprep.subr.bf16.mxu0 0
    %1168 = vmatpush1.bf16.msra.mxu0 0
    %1169 = vmatprep.subr.bf16.mxu0 0
    %1170 = vmatpush1.bf16.msra.mxu0 %v1153
    %1171 = vmatprep.subr.bf16.mxu0 0
    %1172 = vmatpush2.bf16.msra.mxu0 0
    %1173 = vmatprep.subr.bf16.mxu0 0
    %1174 = vmatpush2.bf16.msra.mxu0 0
    %1175 = vmatprep.subr.bf16.mxu0 0
    %1176 = vmatpush2.bf16.msra.mxu0 0
    %1177 = vmatprep.subr.bf16.mxu0 0
    %1178 = vmatpush2.bf16.msra.mxu0 0
    %1179 = vmatprep.subr.bf16.mxu0 0
    %1180 = vmatpush2.bf16.msra.mxu0 0
    %1181 = vmatprep.subr.bf16.mxu0 0
    %1182 = vmatpush2.bf16.msra.mxu0 0
    %1183 = vmatprep.subr.bf16.mxu0 0
    %1184 = vmatpush2.bf16.msra.mxu0 0
    %1185 = vmatprep.subr.bf16.mxu0 0
    %1186 = vmatpush2.bf16.msra.mxu0 0
    %1187 = vmatprep.mubr.bf16.mxu0 0
    %1188 = vmatmul.mubr.bf16.gmra.mxu0 %v1150
    %v1189 = vpop.f32.mrf.mxu0
    %v1190 = vadd.f32 0.0, %v1189
    %v1191 = vpop.f32.mrf.mxu0
    %v1192 = vpop.f32.mrf.mxu0
    %v1193 = vpop.f32.mrf.mxu0
    %1194 = vdwg.mxu0
    %1195 = vrot.lane.b32.xlu0 %v366, 104
    %v1196 = vpop.permute.xlu0 %1195
    %v1198 = vsel %vm373, %v1146, 0
    %v1201 = vsel %vm493, %v1196, 0
    %1203 = vmatprep.subr.bf16.mxu0 0
    %1204 = vmatpush1.bf16.msra.mxu0 0
    %1205 = vmatprep.subr.bf16.mxu0 0
    %1206 = vmatpush1.bf16.msra.mxu0 0
    %1207 = vmatprep.subr.bf16.mxu0 0
    %1208 = vmatpush1.bf16.msra.mxu0 0
    %1209 = vmatprep.subr.bf16.mxu0 0
    %1210 = vmatpush1.bf16.msra.mxu0 0
    %1211 = vmatprep.subr.bf16.mxu0 0
    %1212 = vmatpush1.bf16.msra.mxu0 0
    %1213 = vmatprep.subr.bf16.mxu0 0
    %1214 = vmatpush1.bf16.msra.mxu0 0
    %1215 = vmatprep.subr.bf16.mxu0 0
    %1216 = vmatpush1.bf16.msra.mxu0 0
    %1217 = vmatprep.subr.bf16.mxu0 0
    %1218 = vmatpush1.bf16.msra.mxu0 %v1201
    %1219 = vmatprep.subr.bf16.mxu0 0
    %1220 = vmatpush2.bf16.msra.mxu0 0
    %1221 = vmatprep.subr.bf16.mxu0 0
    %1222 = vmatpush2.bf16.msra.mxu0 0
    %1223 = vmatprep.subr.bf16.mxu0 0
    %1224 = vmatpush2.bf16.msra.mxu0 0
    %1225 = vmatprep.subr.bf16.mxu0 0
    %1226 = vmatpush2.bf16.msra.mxu0 0
    %1227 = vmatprep.subr.bf16.mxu0 0
    %1228 = vmatpush2.bf16.msra.mxu0 0
    %1229 = vmatprep.subr.bf16.mxu0 0
    %1230 = vmatpush2.bf16.msra.mxu0 0
    %1231 = vmatprep.subr.bf16.mxu0 0
    %1232 = vmatpush2.bf16.msra.mxu0 0
    %1233 = vmatprep.subr.bf16.mxu0 0
    %1234 = vmatpush2.bf16.msra.mxu0 0
    %1235 = vmatprep.mubr.bf16.mxu0 0
    %1236 = vmatmul.mubr.bf16.gmra.mxu0 %v1198
    %v1237 = vpop.f32.mrf.mxu0
    %v1238 = vadd.f32 0.0, %v1237
    %v1239 = vpop.f32.mrf.mxu0
    %v1240 = vpop.f32.mrf.mxu0
    %v1241 = vpop.f32.mrf.mxu0
    %1242 = vdwg.mxu0
    %1245 = vrot.lane.b32.xlu0 %v750, 8
    %v1246 = vpop.permute.xlu0 %1245
    %1247 = vrot.lane.b32.xlu0 %v798, 8
    %v1248 = vpop.permute.xlu0 %1247
    %1253 = vrot.lane.b32.xlu0 %v970, 16
    %v1254 = vpop.permute.xlu0 %1253
    %1255 = vrot.lane.b32.xlu0 %v1018, 16
    %v1256 = vpop.permute.xlu0 %1255
    %1261 = vrot.lane.b32.xlu0 %v1190, 24
    %v1262 = vpop.permute.xlu0 %1261
    %1263 = vrot.lane.b32.xlu0 %v1238, 24
    %v1264 = vpop.permute.xlu0 %1263
    %v1267 = vsel %vm373, %v532, %v1246
    %v1268 = vsel %vm373, %v578, %v1248
    %vm1269 = vcmask 130048
    %v1270 = vsel %vm1269, %v1267, %v1254
    %v1271 = vsel %vm1269, %v1268, %v1256
    %vm1272 = vcmask 195584
    %v1273 = vsel %vm1272, %v1270, %v1262
    %v1274 = vsel %vm1272, %v1271, %v1264
    %v1275 = vpack.c.bf16 %v1274, %v1273
    %v1276 = vld [vmem:[#allocation11] sm:$0xf]
    %v1277 = vld [vmem:[#allocation11 + $0x4] sm:$0xf]
    %v1278 = vld [vmem:[#allocation11 + $0x8] sm:$0xf]
    %v1279 = vld [vmem:[#allocation11 + $0xc] sm:$0xf]
    %v1280 = vld [vmem:[#allocation13] sm:$0x1]
    %v1282 = vlaneseq
    %v1283 = vshrl.u32 %v1282, 7
    %v1284 = vsub.s32 0, %v1283
    %v1285 = vrot.slane %v1280, %v1284
    %v1291 = vunpack.c.l.b16 %v1276
    %v1292 = vunpack.c.l.b16 %v1277
    %v1293 = vunpack.c.l.b16 %v1278
    %v1294 = vunpack.c.l.b16 %v1279
    %v1295 = vpack.c.b16 %v1292, %v1291
    %v1296 = vpack.c.b16 %v1294, %v1293
    %v1300 = vsel %vm174, %v1275, 0
    %1302 = vmatprep.subr.bf16.mxu0 0
    %1303 = vmatpush1.bf16.msra.mxu0 0
    %1304 = vmatprep.subr.bf16.mxu0 0
    %1305 = vmatpush1.bf16.msra.mxu0 0
    %1306 = vmatprep.subr.bf16.mxu0 0
    %1307 = vmatpush1.bf16.msra.mxu0 0
    %1308 = vmatprep.subr.bf16.mxu0 0
    %1309 = vmatpush1.bf16.msra.mxu0 0
    %1310 = vmatprep.subr.bf16.mxu0 0
    %1311 = vmatpush1.bf16.msra.mxu0 0
    %1312 = vmatprep.subr.bf16.mxu0 0
    %1313 = vmatpush1.bf16.msra.mxu0 0
    %1314 = vmatprep.subr.bf16.mxu0 0
    %1315 = vmatpush1.bf16.msra.mxu0 %v1296
    %1316 = vmatprep.subr.bf16.mxu0 0
    %1317 = vmatpush1.bf16.msra.mxu0 %v1295
    %1318 = vmatprep.subr.bf16.mxu0 0
    %1319 = vmatpush2.bf16.msra.mxu0 0
    %1320 = vmatprep.subr.bf16.mxu0 0
    %1321 = vmatpush2.bf16.msra.mxu0 0
    %1322 = vmatprep.subr.bf16.mxu0 0
    %1323 = vmatpush2.bf16.msra.mxu0 0
    %1324 = vmatprep.subr.bf16.mxu0 0
    %1325 = vmatpush2.bf16.msra.mxu0 0
    %1326 = vmatprep.subr.bf16.mxu0 0
    %1327 = vmatpush2.bf16.msra.mxu0 0
    %1328 = vmatprep.subr.bf16.mxu0 0
    %1329 = vmatpush2.bf16.msra.mxu0 0
    %1330 = vmatprep.subr.bf16.mxu0 0
    %1331 = vmatpush2.bf16.msra.mxu0 0
    %1332 = vmatprep.subr.bf16.mxu0 0
    %1333 = vmatpush2.bf16.msra.mxu0 0
    %1334 = vmatprep.mubr.bf16.mxu0 0
    %1335 = vmatmul.mubr.bf16.gmra.mxu0 %v1300
    %v1336 = vpop.f32.mrf.mxu0
    %v1337 = vadd.f32 %v1285, %v1336
    %v1338 = vpop.f32.mrf.mxu0
    %v1339 = vpop.f32.mrf.mxu0
    %v1340 = vadd.f32 %v1285, %v1339
    %v1341 = vpop.f32.mrf.mxu0
    %1342 = vdwg.mxu0
    %v1343 = vadd.f32 %v148, %v1337
    %v1344 = vadd.f32 %v149, %v1340
    %v1345 = vsel %vm174, %v1343, 0.0
    %1346 = vadd.xlane.f32.xlu0 %v1345
    %v1347 = vpop.xlane.xlu0 %1346
    %v1348 = vsel %vm174, %v1344, 0.0
    %1349 = vadd.xlane.f32.xlu0 %v1348
    %v1350 = vpop.xlane.xlu0 %1349
    %v1351 = vrcp.pop 32.0
    %v1352 = vmul.f32 %v1347, %v1351
    %v1353 = vmul.f32 %v1350, %v1351
    %v1354 = vsub.f32 %v1343, %v1352
    %v1355 = vsub.f32 %v1344, %v1353
    %v1356 = vmul.f32 %v1354, %v1354
    %v1357 = vmul.f32 %v1355, %v1355
    %v1358 = vsel %vm174, %v1356, 0.0
    %1359 = vadd.xlane.f32.xlu0 %v1358
    %v1360 = vpop.xlane.xlu0 %1359
    %v1361 = vsel %vm174, %v1357, 0.0
    %1362 = vadd.xlane.f32.xlu0 %v1361
    %v1363 = vpop.xlane.xlu0 %1362
    %v1364 = vmul.f32 %v1360, %v1351
    %v1365 = vmul.f32 %v1363, %v1351
    %v1366 = vadd.f32 %v1364, 1e-12
    %v1367 = vadd.f32 %v1365, 1e-12
    %v1368 = vrsqrt.pop %v1366
    %v1369 = vrsqrt.pop %v1367
    %v1370 = vmul.f32 %v1354, %v1368
    %v1371 = vmul.f32 %v1355, %v1369
    %v1372 = vld [vmem:[%s10] sm:$0x1]
    %v1374 = vlaneseq
    %v1375 = vshrl.u32 %v1374, 7
    %v1376 = vsub.s32 0, %v1375
    %v1377 = vrot.slane %v1372, %v1376
    %v1379 = vmul.f32 %v1370, %v1377
    %v1380 = vmul.f32 %v1371, %v1377
    %v1381 = vld [vmem:[%s11] sm:$0x1]
    %v1383 = vlaneseq
    %v1384 = vshrl.u32 %v1383, 7
    %v1385 = vsub.s32 0, %v1384
    %v1386 = vrot.slane %v1381, %v1385
    %v1388 = vadd.f32 %v1379, %v1386
    %v1389 = vadd.f32 %v1380, %v1386
    %v1390 = vpack.c.bf16 %v1389, %v1388
    %v1391 = vld [vmem:[%s12] sm:$0xf]
    %v1392 = vld [vmem:[%s12 + $0x4] sm:$0xf]
    %v1393 = vld [vmem:[%s12 + $0x8] sm:$0xf]
    %v1394 = vld [vmem:[%s12 + $0xc] sm:$0xf]
    %v1395 = vld [vmem:[%s13] sm:$0x1]
    %v1397 = vlaneseq
    %v1398 = vshrl.u32 %v1397, 7
    %v1399 = vsub.s32 0, %v1398
    %v1400 = vrot.slane %v1395, %v1399
    %v1406 = vunpack.c.l.b16 %v1391
    %v1407 = vunpack.c.l.b16 %v1392
    %v1408 = vunpack.c.l.b16 %v1393
    %v1409 = vunpack.c.l.b16 %v1394
    %v1410 = vpack.c.b16 %v1407, %v1406
    %v1411 = vpack.c.b16 %v1409, %v1408
    %v1415 = vsel %vm174, %v1390, 0
    %1417 = vmatprep.subr.bf16.mxu0 0
    %1418 = vmatpush1.bf16.msra.mxu0 0
    %1419 = vmatprep.subr.bf16.mxu0 0
    %1420 = vmatpush1.bf16.msra.mxu0 0
    %1421 = vmatprep.subr.bf16.mxu0 0
    %1422 = vmatpush1.bf16.msra.mxu0 0
    %1423 = vmatprep.subr.bf16.mxu0 0
    %1424 = vmatpush1.bf16.msra.mxu0 0
    %1425 = vmatprep.subr.bf16.mxu0 0
    %1426 = vmatpush1.bf16.msra.mxu0 0
    %1427 = vmatprep.subr.bf16.mxu0 0
    %1428 = vmatpush1.bf16.msra.mxu0 0
    %1429 = vmatprep.subr.bf16.mxu0 0
    %1430 = vmatpush1.bf16.msra.mxu0 %v1411
    %1431 = vmatprep.subr.bf16.mxu0 0
    %1432 = vmatpush1.bf16.msra.mxu0 %v1410
    %1433 = vmatprep.subr.bf16.mxu0 0
    %1434 = vmatpush2.bf16.msra.mxu0 0
    %1435 = vmatprep.subr.bf16.mxu0 0
    %1436 = vmatpush2.bf16.msra.mxu0 0
    %1437 = vmatprep.subr.bf16.mxu0 0
    %1438 = vmatpush2.bf16.msra.mxu0 0
    %1439 = vmatprep.subr.bf16.mxu0 0
    %1440 = vmatpush2.bf16.msra.mxu0 0
    %1441 = vmatprep.subr.bf16.mxu0 0
    %1442 = vmatpush2.bf16.msra.mxu0 0
    %1443 = vmatprep.subr.bf16.mxu0 0
    %1444 = vmatpush2.bf16.msra.mxu0 0
    %1445 = vmatprep.subr.bf16.mxu0 0
    %1446 = vmatpush2.bf16.msra.mxu0 0
    %1447 = vmatprep.subr.bf16.mxu0 0
    %1448 = vmatpush2.bf16.msra.mxu0 0
    %1449 = vmatprep.mubr.bf16.mxu0 0
    %1450 = vmatmul.mubr.bf16.gmra.mxu0 %v1415
    %v1451 = vpop.f32.mrf.mxu0
    %v1452 = vadd.f32 %v1400, %v1451
    %v1453 = vpop.f32.mrf.mxu0
    %v1454 = vpop.f32.mrf.mxu0
    %v1455 = vadd.f32 %v1400, %v1454
    %v1456 = vpop.f32.mrf.mxu0
    %1457 = vdwg.mxu0
    %v1458 = vmax.f32 %v1452, 0.0
    %v1459 = vmax.f32 %v1455, 0.0
    %v1460 = vpack.c.bf16 %v1459, %v1458
    %v1461 = vld [vmem:[%s14] sm:$0xf]
    %v1462 = vld [vmem:[%s14 + $0x4] sm:$0xf]
    %v1463 = vld [vmem:[%s14 + $0x8] sm:$0xf]
    %v1464 = vld [vmem:[%s14 + $0xc] sm:$0xf]
    %v1465 = vld [vmem:[%s14 + $0x10] sm:$0xf]
    %v1466 = vld [vmem:[%s14 + $0x14] sm:$0xf]
    %v1467 = vld [vmem:[%s14 + $0x18] sm:$0xf]
    %v1468 = vld [vmem:[%s14 + $0x1c] sm:$0xf]
    %v1469 = vld [vmem:[%s15] sm:$0x1]
    %v1471 = vlaneseq
    %v1472 = vshrl.u32 %v1471, 7
    %v1473 = vsub.s32 0, %v1472
    %v1474 = vrot.slane %v1469, %v1473
    %v1484 = vunpack.c.l.b16 %v1461
    %v1485 = vunpack.c.l.b16 %v1462
    %v1486 = vunpack.c.l.b16 %v1463
    %v1487 = vunpack.c.l.b16 %v1464
    %v1488 = vunpack.c.l.b16 %v1465
    %v1489 = vunpack.c.l.b16 %v1466
    %v1490 = vunpack.c.l.b16 %v1467
    %v1491 = vunpack.c.l.b16 %v1468
    %v1492 = vpack.c.b16 %v1485, %v1484
    %v1493 = vpack.c.b16 %v1487, %v1486
    %v1494 = vpack.c.b16 %v1489, %v1488
    %v1495 = vpack.c.b16 %v1491, %v1490
    %vm1500 = vcmask 523264
    %v1502 = vsel %vm1500, %v1460, 0
    %1504 = vmatprep.subr.bf16.mxu0 0
    %1505 = vmatpush1.bf16.msra.mxu0 0
    %1506 = vmatprep.subr.bf16.mxu0 0
    %1507 = vmatpush1.bf16.msra.mxu0 0
    %1508 = vmatprep.subr.bf16.mxu0 0
    %1509 = vmatpush1.bf16.msra.mxu0 0
    %1510 = vmatprep.subr.bf16.mxu0 0
    %1511 = vmatpush1.bf16.msra.mxu0 0
    %1512 = vmatprep.subr.bf16.mxu0 0
    %1513 = vmatpush1.bf16.msra.mxu0 %v1495
    %1514 = vmatprep.subr.bf16.mxu0 0
    %1515 = vmatpush1.bf16.msra.mxu0 %v1494
    %1516 = vmatprep.subr.bf16.mxu0 0
    %1517 = vmatpush1.bf16.msra.mxu0 %v1493
    %1518 = vmatprep.subr.bf16.mxu0 0
    %1519 = vmatpush1.bf16.msra.mxu0 %v1492
    %1520 = vmatprep.subr.bf16.mxu0 0
    %1521 = vmatpush2.bf16.msra.mxu0 0
    %1522 = vmatprep.subr.bf16.mxu0 0
    %1523 = vmatpush2.bf16.msra.mxu0 0
    %1524 = vmatprep.subr.bf16.mxu0 0
    %1525 = vmatpush2.bf16.msra.mxu0 0
    %1526 = vmatprep.subr.bf16.mxu0 0
    %1527 = vmatpush2.bf16.msra.mxu0 0
    %1528 = vmatprep.subr.bf16.mxu0 0
    %1529 = vmatpush2.bf16.msra.mxu0 0
    %1530 = vmatprep.subr.bf16.mxu0 0
    %1531 = vmatpush2.bf16.msra.mxu0 0
    %1532 = vmatprep.subr.bf16.mxu0 0
    %1533 = vmatpush2.bf16.msra.mxu0 0
    %1534 = vmatprep.subr.bf16.mxu0 0
    %1535 = vmatpush2.bf16.msra.mxu0 0
    %1536 = vmatprep.mubr.bf16.mxu0 0
    %1537 = vmatmul.mubr.bf16.gmra.mxu0 %v1502
    %v1538 = vpop.f32.mrf.mxu0
    %v1539 = vadd.f32 %v1474, %v1538
    %v1540 = vpop.f32.mrf.mxu0
    %v1541 = vpop.f32.mrf.mxu0
    %v1542 = vadd.f32 %v1474, %v1541
    %v1543 = vpop.f32.mrf.mxu0
    %1544 = vdwg.mxu0
    %v1545 = vadd.f32 %v1539, %v1388
    %v1546 = vadd.f32 %v1542, %v1389
    %v1547 = vsel %vm174, %v1545, 0.0
    %1548 = vadd.xlane.f32.xlu0 %v1547
    %v1549 = vpop.xlane.xlu0 %1548
    %v1550 = vsel %vm174, %v1546, 0.0
    %1551 = vadd.xlane.f32.xlu0 %v1550
    %v1552 = vpop.xlane.xlu0 %1551
    %v1553 = vmul.f32 %v1549, %v1351
    %v1554 = vmul.f32 %v1552, %v1351
    %v1555 = vsub.f32 %v1545, %v1553
    %v1556 = vsub.f32 %v1546, %v1554
    %v1557 = vmul.f32 %v1555, %v1555
    %v1558 = vmul.f32 %v1556, %v1556
    %v1559 = vsel %vm174, %v1557, 0.0
    %1560 = vadd.xlane.f32.xlu0 %v1559
    %v1561 = vpop.xlane.xlu0 %1560
    %v1562 = vsel %vm174, %v1558, 0.0
    %1563 = vadd.xlane.f32.xlu0 %v1562
    %v1564 = vpop.xlane.xlu0 %1563
    %v1565 = vmul.f32 %v1561, %v1351
    %v1566 = vmul.f32 %v1564, %v1351
    %v1567 = vadd.f32 %v1565, 1e-12
    %v1568 = vadd.f32 %v1566, 1e-12
    %v1569 = vrsqrt.pop %v1567
    %v1570 = vrsqrt.pop %v1568
    %v1571 = vmul.f32 %v1555, %v1569
    %v1572 = vmul.f32 %v1556, %v1570
    %v1573 = vld [vmem:[%s16] sm:$0x1]
    %v1575 = vlaneseq
    %v1576 = vshrl.u32 %v1575, 7
    %v1577 = vsub.s32 0, %v1576
    %v1578 = vrot.slane %v1573, %v1577
    %v1580 = vmul.f32 %v1571, %v1578
    %v1581 = vmul.f32 %v1572, %v1578
    %v1582 = vld [vmem:[%s17] sm:$0x1]
    %v1584 = vlaneseq
    %v1585 = vshrl.u32 %v1584, 7
    %v1586 = vsub.s32 0, %v1585
    %v1587 = vrot.slane %v1582, %v1586
    %v1589 = vadd.f32 %v1580, %v1587
    %v1590 = vadd.f32 %v1581, %v1587
    %1591 = vst.msk [vmem:[#allocation14] sm:$0xff] %vm174, %v1589
    %1592 = vst.msk [vmem:[#allocation14 + $0x8] sm:$0xff] %vm174, %v1590
    // Predicated region
    $region102: #{tpu_custom_call.1} parent=1 // pred_check
      _
    $region103: #{tpu_custom_call.1} parent=1 // pred_check_branch
      %1594 = sbr.rel (0) target = $region105
    $region104: #{tpu_custom_call.1} parent=1 // pred_region
      %s1596 = ssub.s32 256, 256
      %1597 = vsyncadd [#allocation4], %s1596
      %s1598 = sshll.u32 [#allocation14], 4
      %s1599 = int_to_ptr.vmem [resolvable:$true] %s1598
      %1604 = dma.vmem_to_hbm [thread:$0]  %s1599, 256, %s18, [#allocation4], 128, 128, 8
    $region105: #{tpu_custom_call.1} parent=1 // pred_fallthru
      _
    // Predicated region
    $region106: #{tpu_custom_call.1} parent=1 // pred_check
      _
    $region107: #{tpu_custom_call.1} parent=1 // pred_check_branch
      %1606 = sbr.rel (0) target = $region109
    $region108: #{tpu_custom_call.1} parent=1 // pred_region
      %1607 = dma.done [#allocation4], 256
    $region109: #{tpu_custom_call.1} parent=1 // pred_fallthru
      _
    %1608 = vsyncpa [#allocation3], 1
    %1609 = vsyncpa [#allocation6], 1
    %1610 = vsyncpa [#allocation9], 1
    %1611 = vsyncpa [#allocation12], 1
    %1612 = vsyncpa [#allocation4], 1

</llo_original>
